<compile_context>
chip_gen: v6e
topology: v6e:2x2x1
jax: 0.10.0
libtpu: 0.0.40
codegen_flags: <defaults>
</compile_context>

<pallas_src>
import functools

import jax
import jax.numpy as jnp
from jax import lax
from jax.experimental import pallas as pl
from jax.experimental.pallas import tpu as pltpu


def _round_up(v, m):
    return (v + m - 1) // m * m


# --------------------------------------------------------------------------
# Kernel 1: fused  qkv GEMM + sampling_offsets GEMM + pixel-space locations
# --------------------------------------------------------------------------
def _qkv_offsets_kernel(x_ref, refxy_ref, wq_ref, wk_ref, wv_ref,
                        bq_ref, bk_ref, bv_ref, wo_ref, bo_ref,
                        q_ref, k_ref, v_ref, loc_ref, *,
                        Hs, Ws, nHP, matmul_dtype):
    md = matmul_dtype
    x = x_ref[...].astype(md)
    q = jnp.dot(x, wq_ref[...].astype(md),
                preferred_element_type=jnp.float32) + bq_ref[...]
    k = jnp.dot(x, wk_ref[...].astype(md),
                preferred_element_type=jnp.float32) + bk_ref[...]
    v = jnp.dot(x, wv_ref[...].astype(md),
                preferred_element_type=jnp.float32) + bv_ref[...]
    # sampling offsets from the (unscaled) q tile while it is still in VMEM
    off = jnp.dot(q.astype(md), wo_ref[...].astype(md),
                  preferred_element_type=jnp.float32) + bo_ref[...]
    # pixel-space sampling locations (grid_sample, align_corners=False):
    #   pix = ref * size + off - 0.5 ; columns are [all x | all y] de-interleaved
    cidx = lax.broadcasted_iota(jnp.int32, off.shape, 1)
    sizes = jnp.where(cidx < nHP, jnp.float32(Ws), jnp.float32(Hs))
    loc = refxy_ref[...] * sizes + off - 0.5

    q_ref[...] = q.astype(q_ref.dtype)
    k_ref[...] = k.astype(k_ref.dtype)
    v_ref[...] = v.astype(v_ref.dtype)
    loc_ref[...] = loc.astype(loc_ref.dtype)


# --------------------------------------------------------------------------
# Kernel 2: deformable sample-attention (separable bilinear) + fused proj
# --------------------------------------------------------------------------
def _attn_proj_kernel(q_ref, kv_ref, loc_ref, pw_ref, pb_ref, o_ref, *,
                      Hs, Ws, num_heads, head_dim, n_points, scale,
                      matmul_dtype):
    md = matmul_dtype
    nHP = num_heads * n_points
    hd2 = 2 * head_dim
    W2 = Ws * hd2

    q = q_ref[0, :, :] * scale        # (N, Lp)   scale folded in once
    kv = kv_ref[0, :, :]              # (nH*Hs, W2)  per-head spatial K|V slab
    loc = loc_ref[0, :, :]            # (N, OffP)  [x | y] pixel coords per (h,p)
    N = q.shape[0]

    rows_y = lax.broadcasted_iota(jnp.int32, (N, Hs), 1)
    rows_x = lax.broadcasted_iota(jnp.int32, (N, Ws), 1)
    # constant lane-expansion / group-sum matrices (built once per grid step)
    e_i = lax.broadcasted_iota(jnp.int32, (Ws, W2), 0)
    e_j = lax.broadcasted_iota(jnp.int32, (Ws, W2), 1)
    expand = (e_j // hd2 == e_i).astype(md)        # (Ws, W2): wx -> lane groups
    a_i = lax.broadcasted_iota(jnp.int32, (W2, hd2), 0)
    a_j = lax.broadcasted_iota(jnp.int32, (W2, hd2), 1)
    group_sum = (a_i % hd2 == a_j).astype(md)      # (W2, 2hd): sum over Ws groups

    head_outs = []
    for h in range(num_heads):
        qh = q[:, h * head_dim:(h + 1) * head_dim]              # (N, hd)
        kv_h = kv[h * Hs:(h + 1) * Hs, :].astype(md)            # (Hs, W2)
        px = loc[:, h * n_points:(h + 1) * n_points]            # (N, P)
        py = loc[:, nHP + h * n_points: nHP + (h + 1) * n_points]

        logits = []
        svs = []
        for p in range(n_points):
            xp = px[:, p:p + 1]
            yp = py[:, p:p + 1]
            x0 = jnp.floor(xp)
            y0 = jnp.floor(yp)
            tx = xp - x0
            ty = yp - y0
            x0i = x0.astype(jnp.int32)
            y0i = y0.astype(jnp.int32)
            # Separable bilinear weights: rows outside [0, size) never match the
            # iota, which reproduces grid_sample's padding_mode='zeros'.
            wy = (jnp.where(rows_y == y0i, 1.0 - ty, 0.0)
                  + jnp.where(rows_y == y0i + 1, ty, 0.0))       # (N, Hs)
            wx = (jnp.where(rows_x == x0i, 1.0 - tx, 0.0)
                  + jnp.where(rows_x == x0i + 1, tx, 0.0))       # (N, Ws)
            t = jnp.dot(wy.astype(md), kv_h,
                        preferred_element_type=jnp.float32)      # (N, W2)
            wxe = jnp.dot(wx.astype(md), expand,
                          preferred_element_type=jnp.float32)    # (N, W2)
            s = jnp.dot((t * wxe).astype(md), group_sum,
                        preferred_element_type=jnp.float32)      # (N, 2hd)
            logits.append(jnp.sum(qh * s[:, :head_dim], axis=-1, keepdims=True))
            svs.append(s[:, head_dim:])

        lg = jnp.concatenate(logits, axis=-1)                    # (N, P)
        m = jnp.max(lg, axis=-1, keepdims=True)
        e = jnp.exp(lg - m)
        attn = e * pl.reciprocal(jnp.sum(e, axis=-1, keepdims=True), approx=True)
        oh = attn[:, 0:1] * svs[0]
        for p in range(1, n_points):
            oh = oh + attn[:, p:p + 1] * svs[p]
        head_outs.append(oh)

    out = jnp.concatenate(head_outs, axis=-1)                    # (N, L)
    # fused output projection (proj_drop p=0 -> identity)
    y = jnp.dot(out.astype(md), pw_ref[...].astype(md),
                preferred_element_type=jnp.float32) + pb_ref[...]
    o_ref[0, :, :] = y.astype(o_ref.dtype)


# --------------------------------------------------------------------------
# Full forward (matches SampleAttention.forward, eval mode)
# --------------------------------------------------------------------------
def sample_attention_forward(x, H, W, deform_inputs, params, *,
                             num_heads=8, n_points=8, tile_m=512,
                             matmul_dtype=jnp.float32):
    """deform_inputs = (reference_points (B,N,2) in [0,1], (Hs, Ws) static ints).
    params = (qkv_w (C,3L), qkv_b (3L,), off_w (L,nH*P*2), off_b, proj_w (L,dim),
    proj_b) with weights stored as (in, out) == PyTorch weight.T.
    Set matmul_dtype=jnp.bfloat16 on v6e/v7x (native MXU path, f32 accumulate)."""
    del H, W  # unused by the reference forward as well
    reference_points, input_spatial_shapes = deform_inputs
    # NOTE: spatial shape must be static Python ints (it drives reshapes in the
    # PyTorch module as well); passing traced values here is unsupported.
    Hs, Ws = int(input_spatial_shapes[0]), int(input_spatial_shapes[1])
    qkv_w, qkv_b, off_w, off_b, proj_w, proj_b = params

    B, N, C = x.shape
    assert N == Hs * Ws, "token count must equal Hs * Ws"
    L = qkv_w.shape[1] // 3                     # all_head_dim
    hd = L // num_heads
    scale = float(hd) ** -0.5
    dim_out = proj_w.shape[1]
    nHP = num_heads * n_points
    Lp = _round_up(L, 128)
    OffP = _round_up(2 * nHP, 128)
    Dp = _round_up(dim_out, 128)
    W2 = Ws * 2 * hd
    f32 = jnp.float32

    # ---- parameter preprocessing (zero-pad to 128 lanes, de-interleave) -----
    def pad_cols(m, width):
        return jnp.pad(m, ((0, 0), (0, width - m.shape[1])))

    wq = pad_cols(qkv_w[:, :L].astype(f32), Lp)
    wk = pad_cols(qkv_w[:, L:2 * L].astype(f32), Lp)
    wv = pad_cols(qkv_w[:, 2 * L:3 * L].astype(f32), Lp)
    bq = jnp.pad(qkv_b[:L].astype(f32), (0, Lp - L)).reshape(1, Lp)
    bk = jnp.pad(qkv_b[L:2 * L].astype(f32), (0, Lp - L)).reshape(1, Lp)
    bv = jnp.pad(qkv_b[2 * L:3 * L].astype(f32), (0, Lp - L)).reshape(1, Lp)
    # offsets weight/bias: de-interleave (h,p,xy) columns -> [all x | all y];
    # zero-padded rows (>= L) multiply q's zero-padded columns, so exact.
    ow = off_w.astype(f32).reshape(L, nHP, 2)
    ow = jnp.concatenate([ow[:, :, 0], ow[:, :, 1]], axis=-1)
    ow = jnp.pad(ow, ((0, Lp - L), (0, OffP - 2 * nHP)))
    ob = off_b.astype(f32).reshape(nHP, 2)
    ob = jnp.pad(jnp.concatenate([ob[:, 0], ob[:, 1]], axis=0),
                 (0, OffP - 2 * nHP)).reshape(1, OffP)
    pw = pad_cols(proj_w.astype(f32), Dp)                         # (L, Dp)
    pb = jnp.pad(proj_b.astype(f32), (0, Dp - dim_out)).reshape(1, Dp)

    # reference points expanded to the de-interleaved offsets layout
    ref2 = reference_points.reshape(B * N, 2).astype(f32)
    ref_xy = jnp.concatenate(
        [jnp.broadcast_to(ref2[:, 0:1], (B * N, nHP)),
         jnp.broadcast_to(ref2[:, 1:2], (B * N, nHP))], axis=-1)
    ref_xy = jnp.pad(ref_xy, ((0, 0), (0, OffP - 2 * nHP)))

    # ---- kernel 1: fused qkv + sampling offsets + sampling locations --------
    x2d = x.reshape(B * N, C).astype(f32)
    M = B * N
    tm = min(tile_m, _round_up(M, 8))
    Mp = _round_up(M, tm)
    if Mp != M:
        x2d = jnp.pad(x2d, ((0, Mp - M), (0, 0)))
        ref_xy = jnp.pad(ref_xy, ((0, Mp - M), (0, 0)))

    resident = lambda i: (0, 0)   # weights/biases stay resident across M tiles
    q2d, k2d, v2d, loc2d = pl.pallas_call(
        functools.partial(_qkv_offsets_kernel, Hs=Hs, Ws=Ws, nHP=nHP,
                          matmul_dtype=matmul_dtype),
        out_shape=(jax.ShapeDtypeStruct((Mp, Lp), f32),
                   jax.ShapeDtypeStruct((Mp, Lp), f32),
                   jax.ShapeDtypeStruct((Mp, Lp), f32),
                   jax.ShapeDtypeStruct((Mp, OffP), f32)),
        grid_spec=pl.GridSpec(
            grid=(Mp // tm,),
            in_specs=[
                pl.BlockSpec((tm, C), lambda i: (i, 0)),
                pl.BlockSpec((tm, OffP), lambda i: (i, 0)),
                pl.BlockSpec((C, Lp), resident),
                pl.BlockSpec((C, Lp), resident),
                pl.BlockSpec((C, Lp), resident),
                pl.BlockSpec((1, Lp), resident),
                pl.BlockSpec((1, Lp), resident),
                pl.BlockSpec((1, Lp), resident),
                pl.BlockSpec((Lp, OffP), resident),
                pl.BlockSpec((1, OffP), resident),
            ],
            out_specs=[pl.BlockSpec((tm, Lp), lambda i: (i, 0)),
                       pl.BlockSpec((tm, Lp), lambda i: (i, 0)),
                       pl.BlockSpec((tm, Lp), lambda i: (i, 0)),
                       pl.BlockSpec((tm, OffP), lambda i: (i, 0))],
        ),
        compiler_params=pltpu.CompilerParams(
            dimension_semantics=("parallel",),
            # <= 48 MiB keeps headroom on v7x (64 MiB physical); raise on
            # v5e/v6e (128 MiB physical) if tiles are enlarged.
            vmem_limit_bytes=48 * 1024 * 1024,
        ),
        cost_estimate=pl.CostEstimate(
            flops=int(2 * Mp * C * 3 * Lp + 2 * Mp * Lp * OffP + 4 * Mp * OffP),
            transcendentals=0,
            bytes_accessed=int(4 * (Mp * C + Mp * OffP + 3 * C * Lp + Lp * OffP
                                    + 3 * Mp * Lp + Mp * OffP)),
        ),
    )(x2d, ref_xy, wq, wk, wv, bq, bk, bv, ow, ob)

    if Mp != M:
        q2d, k2d, v2d, loc2d = tuple(t[:M] for t in (q2d, k2d, v2d, loc2d))

    q3 = q2d.reshape(B, N, Lp)
    loc3 = loc2d.reshape(B, N, OffP)
    # K|V rearranged once (tiny XLA op) to the per-head spatial slab
    # (B, nH*Hs, Ws*2*hd) so the attention kernel needs no minor-dim reshapes.
    k5 = k2d[:, :L].reshape(B, Hs, Ws, num_heads, hd)
    v5 = v2d[:, :L].reshape(B, Hs, Ws, num_heads, hd)
    kv_sp = jnp.transpose(jnp.concatenate([k5, v5], axis=-1), (0, 3, 1, 2, 4))
    kv_sp = kv_sp.reshape(B, num_heads * Hs, W2)

    # ---- kernel 2: deformable attention + fused output projection -----------
    # NOTE: for large Hs*Ws add an N-tile grid axis here (kv_sp resident via a
    # constant index_map over that axis) to stay inside v7x's 64 MiB VMEM.
    out3 = pl.pallas_call(
        functools.partial(_attn_proj_kernel, Hs=Hs, Ws=Ws, num_heads=num_heads,
                          head_dim=hd, n_points=n_points, scale=scale,
                          matmul_dtype=matmul_dtype),
        out_shape=jax.ShapeDtypeStruct((B, N, Dp), f32),
        grid_spec=pl.GridSpec(
            grid=(B,),
            in_specs=[
                pl.BlockSpec((1, N, Lp), lambda b: (b, 0, 0)),
                pl.BlockSpec((1, num_heads * Hs, W2), lambda b: (b, 0, 0)),
                pl.BlockSpec((1, N, OffP), lambda b: (b, 0, 0)),
                pl.BlockSpec((L, Dp), lambda b: (0, 0)),
                pl.BlockSpec((1, Dp), lambda b: (0, 0)),
            ],
            out_specs=pl.BlockSpec((1, N, Dp), lambda b: (b, 0, 0)),
        ),
        compiler_params=pltpu.CompilerParams(
            dimension_semantics=("parallel",),
            vmem_limit_bytes=48 * 1024 * 1024,
        ),
        cost_estimate=pl.CostEstimate(
            flops=int(B * num_heads * n_points
                      * (2 * N * Hs * W2 + 2 * N * Ws * W2
                         + 2 * N * W2 * 2 * hd + 3 * N * W2)
                      + 2 * B * N * L * Dp),
            transcendentals=int(B * num_heads * N * n_points),
            bytes_accessed=int(4 * (B * (N * Lp + num_heads * Hs * W2
                                         + N * OffP + N * Dp) + L * Dp + Dp)),
        ),
    )(q3, kv_sp, loc3, pw, pb)

    return out3[:, :, :dim_out]


# --------------------------------------------------------------------------
# Pure-JAX reference (mirrors the PyTorch forward) for validation
# --------------------------------------------------------------------------
def reference_forward(x, ref_pts, Hs, Ws, params, *, num_heads, n_points):
    qkv_w, qkv_b, off_w, off_b, proj_w, proj_b = params
    B, N, C = x.shape
    L = qkv_w.shape[1] // 3
    hd = L // num_heads
    scale = hd ** (-0.5)

    qkv = x @ qkv_w + qkv_b
    q, k, v = qkv[..., :L], qkv[..., L:2 * L], qkv[..., 2 * L:]
    off = (q @ off_w + off_b).reshape(B, N, num_heads, n_points, 2)
    off = jnp.transpose(off, (0, 2, 1, 3, 4))
    px = ref_pts[:, None, :, None, 0] * Ws + off[..., 0] - 0.5
    py = ref_pts[:, None, :, None, 1] * Hs + off[..., 1] - 0.5

    qh = q.reshape(B, N, num_heads, hd).transpose(0, 2, 1, 3)
    kh = k.reshape(B, N, num_heads, hd).transpose(0, 2, 1, 3)
    vh = v.reshape(B, N, num_heads, hd).transpose(0, 2, 1, 3)

    def bsample(feat):  # feat: (B, nH, HW, hd)
        x0 = jnp.floor(px)
        y0 = jnp.floor(py)
        tx = px - x0
        ty = py - y0
        x0i = x0.astype(jnp.int32)
        y0i = y0.astype(jnp.int32)
        acc = jnp.zeros((B, num_heads, N, n_points, hd), jnp.float32)
        for dy, dx in ((0, 0), (0, 1), (1, 0), (1, 1)):
            xi = x0i + dx
            yi = y0i + dy
            w = (tx if dx else 1.0 - tx) * (ty if dy else 1.0 - ty)
            valid = ((xi >= 0) & (xi < Ws) & (yi >= 0) & (yi < Hs)).astype(jnp.float32)
            idx = jnp.clip(yi * Ws + xi, 0, Hs * Ws - 1).reshape(B, num_heads, N * n_points)
            g = jnp.take_along_axis(feat, idx[..., None], axis=2)
            g = g.reshape(B, num_heads, N, n_points, hd)
            acc = acc + (w * valid)[..., None] * g
        return acc

    sk = bsample(kh)
    sv = bsample(vh)
    attn = (qh[:, :, :, None, :] * sk).sum(-1) * scale
    attn = jax.nn.softmax(attn, axis=-1)
    out = (attn[..., None] * sv).sum(-2)
    out = out.transpose(0, 2, 1, 3).reshape(B, N, L)
    return out @ proj_w + proj_b


# --------------------------------------------------------------------------
if __name__ == "__main__":
    B = 2
    dim = 32
    num_heads = 8
    n_points = 8
    Hs = Ws = 16
    N = Hs * Ws
    head_dim = dim // num_heads
    all_head_dim = head_dim * num_heads

    key = jax.random.PRNGKey(0)
    kx, k1, k2, k3, k4, k5 = jax.random.split(key, 6)
    x = jax.random.normal(kx, (B, N, dim), dtype=jnp.float32)

    # Linear params stored as (in, out) == PyTorch weight.T
    qkv_w = jax.random.normal(k1, (dim, 3 * all_head_dim), jnp.float32) * 0.05
    qkv_b = jnp.zeros((3 * all_head_dim,), jnp.float32)            # qkv_bias=False
    off_w = jax.random.normal(k2, (all_head_dim, num_heads * n_points * 2), jnp.float32) * 0.05
    off_b = jax.random.normal(k3, (num_heads * n_points * 2,), jnp.float32) * 0.5
    proj_w = jax.random.normal(k4, (all_head_dim, dim), jnp.float32) * 0.05
    proj_b = jax.random.normal(k5, (dim,), jnp.float32) * 0.01
    params = (qkv_w, qkv_b, off_w, off_b, proj_w, proj_b)

    # deform_inputs: reference points (x, y) in [0,1] at pixel centers + spatial shape
    ys = (jnp.arange(Hs, dtype=jnp.float32) + 0.5) / Hs
    xs = (jnp.arange(Ws, dtype=jnp.float32) + 0.5) / Ws
    gy, gx = jnp.meshgrid(ys, xs, indexing="ij")
    ref_pts = jnp.stack([gx.reshape(-1), gy.reshape(-1)], axis=-1)  # (N, 2)
    ref_pts = jnp.broadcast_to(ref_pts, (B, N, 2))
    deform_inputs = (ref_pts, (Hs, Ws))

    out = sample_attention_forward(x, Hs, Ws, deform_inputs, params,
                                   num_heads=num_heads, n_points=n_points)
    out = jax.block_until_ready(out)
    assert out.shape == (B, N, dim)

    ref_out = reference_forward(x, ref_pts, Hs, Ws, params,
                                num_heads=num_heads, n_points=n_points)
    ref_out = jax.block_until_ready(ref_out)
    max_err = float(jnp.max(jnp.abs(out - ref_out)))
    assert max_err < 2e-2, f"mismatch vs JAX reference: {max_err}"
    print("KERNEL_OK")
</pallas_src>

<mosaic_0001>
module attributes {stable_mosaic.version = 11 : i64} {
  func.func @_qkv_offsets_kernel(%arg0: i32, %arg1: memref<512x32xf32, #tpu.memory_space<vmem>>, %arg2: memref<512x128xf32, #tpu.memory_space<vmem>>, %arg3: memref<32x128xf32, #tpu.memory_space<vmem>>, %arg4: memref<32x128xf32, #tpu.memory_space<vmem>>, %arg5: memref<32x128xf32, #tpu.memory_space<vmem>>, %arg6: memref<1x128xf32, #tpu.memory_space<vmem>>, %arg7: memref<1x128xf32, #tpu.memory_space<vmem>>, %arg8: memref<1x128xf32, #tpu.memory_space<vmem>>, %arg9: memref<128x128xf32, #tpu.memory_space<vmem>>, %arg10: memref<1x128xf32, #tpu.memory_space<vmem>>, %arg11: memref<512x128xf32, #tpu.memory_space<vmem>>, %arg12: memref<512x128xf32, #tpu.memory_space<vmem>>, %arg13: memref<512x128xf32, #tpu.memory_space<vmem>>, %arg14: memref<512x128xf32, #tpu.memory_space<vmem>>) attributes {dimension_semantics = [#tpu.dimension_semantics<parallel>], iteration_bounds = array<i64: 1>, scalar_prefetch = 0 : i64, scratch_operands = 0 : i64, tpu.core_type = #tpu.core_type<tc>, window_params = [{transform_indices = @transform_0, window_bounds = array<i64: 512, 32>}, {transform_indices = @transform_1, window_bounds = array<i64: 512, 128>}, {pipeline_mode = #tpu.pipeline_mode<synchronous>, transform_indices = @transform_2, window_bounds = array<i64: 32, 128>}, {pipeline_mode = #tpu.pipeline_mode<synchronous>, transform_indices = @transform_3, window_bounds = array<i64: 32, 128>}, {pipeline_mode = #tpu.pipeline_mode<synchronous>, transform_indices = @transform_4, window_bounds = array<i64: 32, 128>}, {pipeline_mode = #tpu.pipeline_mode<synchronous>, transform_indices = @transform_5, window_bounds = array<i64: 1, 128>}, {pipeline_mode = #tpu.pipeline_mode<synchronous>, transform_indices = @transform_6, window_bounds = array<i64: 1, 128>}, {pipeline_mode = #tpu.pipeline_mode<synchronous>, transform_indices = @transform_7, window_bounds = array<i64: 1, 128>}, {pipeline_mode = #tpu.pipeline_mode<synchronous>, transform_indices = @transform_8, window_bounds = array<i64: 128, 128>}, {pipeline_mode = #tpu.pipeline_mode<synchronous>, transform_indices = @transform_9, window_bounds = array<i64: 1, 128>}, {transform_indices = @transform_10, window_bounds = array<i64: 512, 128>}, {transform_indices = @transform_11, window_bounds = array<i64: 512, 128>}, {transform_indices = @transform_12, window_bounds = array<i64: 512, 128>}, {transform_indices = @transform_13, window_bounds = array<i64: 512, 128>}]} {
    %c0 = arith.constant 0 : index
    %c0_0 = arith.constant 0 : index
    %0 = vector.load %arg1[%c0, %c0_0] : memref<512x32xf32, #tpu.memory_space<vmem>>, vector<512x32xf32>
    %c0_1 = arith.constant 0 : index
    %c0_2 = arith.constant 0 : index
    %1 = vector.load %arg3[%c0_1, %c0_2] : memref<32x128xf32, #tpu.memory_space<vmem>>, vector<32x128xf32>
    %cst = arith.constant dense<0.000000e+00> : vector<512x128xf32>
    %2 = tpu.matmul %0, %1, %cst {dimension_numbers = #tpu.dot_dimension_numbers<[1], [0], [0], [1], [0, 0, 1, 1], [], []>} : vector<512x32xf32>, vector<32x128xf32>, vector<512x128xf32> -> vector<512x128xf32>
    %c0_3 = arith.constant 0 : index
    %c0_4 = arith.constant 0 : index
    %3 = vector.load %arg6[%c0_3, %c0_4] : memref<1x128xf32, #tpu.memory_space<vmem>>, vector<1x128xf32>
    %4 = vector.broadcast %3 : vector<1x128xf32> to vector<512x128xf32>
    %5 = arith.addf %2, %4 : vector<512x128xf32>
    %c0_5 = arith.constant 0 : index
    %c0_6 = arith.constant 0 : index
    %6 = vector.load %arg4[%c0_5, %c0_6] : memref<32x128xf32, #tpu.memory_space<vmem>>, vector<32x128xf32>
    %cst_7 = arith.constant dense<0.000000e+00> : vector<512x128xf32>
    %7 = tpu.matmul %0, %6, %cst_7 {dimension_numbers = #tpu.dot_dimension_numbers<[1], [0], [0], [1], [0, 0, 1, 1], [], []>} : vector<512x32xf32>, vector<32x128xf32>, vector<512x128xf32> -> vector<512x128xf32>
    %c0_8 = arith.constant 0 : index
    %c0_9 = arith.constant 0 : index
    %8 = vector.load %arg7[%c0_8, %c0_9] : memref<1x128xf32, #tpu.memory_space<vmem>>, vector<1x128xf32>
    %9 = vector.broadcast %8 : vector<1x128xf32> to vector<512x128xf32>
    %10 = arith.addf %7, %9 : vector<512x128xf32>
    %c0_10 = arith.constant 0 : index
    %c0_11 = arith.constant 0 : index
    %11 = vector.load %arg5[%c0_10, %c0_11] : memref<32x128xf32, #tpu.memory_space<vmem>>, vector<32x128xf32>
    %cst_12 = arith.constant dense<0.000000e+00> : vector<512x128xf32>
    %12 = tpu.matmul %0, %11, %cst_12 {dimension_numbers = #tpu.dot_dimension_numbers<[1], [0], [0], [1], [0, 0, 1, 1], [], []>} : vector<512x32xf32>, vector<32x128xf32>, vector<512x128xf32> -> vector<512x128xf32>
    %c0_13 = arith.constant 0 : index
    %c0_14 = arith.constant 0 : index
    %13 = vector.load %arg8[%c0_13, %c0_14] : memref<1x128xf32, #tpu.memory_space<vmem>>, vector<1x128xf32>
    %14 = vector.broadcast %13 : vector<1x128xf32> to vector<512x128xf32>
    %15 = arith.addf %12, %14 : vector<512x128xf32>
    %c0_15 = arith.constant 0 : index
    %c0_16 = arith.constant 0 : index
    %16 = vector.load %arg9[%c0_15, %c0_16] : memref<128x128xf32, #tpu.memory_space<vmem>>, vector<128x128xf32>
    %cst_17 = arith.constant dense<0.000000e+00> : vector<512x128xf32>
    %17 = tpu.matmul %5, %16, %cst_17 {dimension_numbers = #tpu.dot_dimension_numbers<[1], [0], [0], [1], [0, 0, 1, 1], [], []>} : vector<512x128xf32>, vector<128x128xf32>, vector<512x128xf32> -> vector<512x128xf32>
    %c0_18 = arith.constant 0 : index
    %c0_19 = arith.constant 0 : index
    %18 = vector.load %arg10[%c0_18, %c0_19] : memref<1x128xf32, #tpu.memory_space<vmem>>, vector<1x128xf32>
    %19 = vector.broadcast %18 : vector<1x128xf32> to vector<512x128xf32>
    %20 = arith.addf %17, %19 : vector<512x128xf32>
    %21 = tpu.iota {dimensions = array<i32: 1>} : vector<512x128xi32>
    %c64_i32 = arith.constant 64 : i32
    %22 = vector.broadcast %c64_i32 : i32 to vector<512x128xi32>
    %23 = arith.cmpi slt, %21, %22 : vector<512x128xi32>
    %cst_20 = arith.constant 1.600000e+01 : f32
    %cst_21 = arith.constant 1.600000e+01 : f32
    %24 = vector.broadcast %cst_20 : f32 to vector<512x128xf32>
    %25 = vector.broadcast %cst_21 : f32 to vector<512x128xf32>
    %26 = arith.select %23, %24, %25 : vector<512x128xi1>, vector<512x128xf32>
    %c0_22 = arith.constant 0 : index
    %c0_23 = arith.constant 0 : index
    %27 = vector.load %arg2[%c0_22, %c0_23] : memref<512x128xf32, #tpu.memory_space<vmem>>, vector<512x128xf32>
    %28 = arith.mulf %27, %26 : vector<512x128xf32>
    %29 = arith.addf %28, %20 : vector<512x128xf32>
    %cst_24 = arith.constant 5.000000e-01 : f32
    %30 = vector.broadcast %cst_24 : f32 to vector<512x128xf32>
    %31 = arith.subf %29, %30 : vector<512x128xf32>
    %c0_25 = arith.constant 0 : index
    %c0_26 = arith.constant 0 : index
    %32 = vector.load %arg11[%c0_25, %c0_26] : memref<512x128xf32, #tpu.memory_space<vmem>>, vector<512x128xf32>
    tpu.vector_store %arg11[%c0_25, %c0_26], %5 {strides = array<i32>} : memref<512x128xf32, #tpu.memory_space<vmem>>, vector<512x128xf32>,
    %c0_27 = arith.constant 0 : index
    %c0_28 = arith.constant 0 : index
    %33 = vector.load %arg12[%c0_27, %c0_28] : memref<512x128xf32, #tpu.memory_space<vmem>>, vector<512x128xf32>
    tpu.vector_store %arg12[%c0_27, %c0_28], %10 {strides = array<i32>} : memref<512x128xf32, #tpu.memory_space<vmem>>, vector<512x128xf32>,
    %c0_29 = arith.constant 0 : index
    %c0_30 = arith.constant 0 : index
    %34 = vector.load %arg13[%c0_29, %c0_30] : memref<512x128xf32, #tpu.memory_space<vmem>>, vector<512x128xf32>
    tpu.vector_store %arg13[%c0_29, %c0_30], %15 {strides = array<i32>} : memref<512x128xf32, #tpu.memory_space<vmem>>, vector<512x128xf32>,
    %c0_31 = arith.constant 0 : index
    %c0_32 = arith.constant 0 : index
    %35 = vector.load %arg14[%c0_31, %c0_32] : memref<512x128xf32, #tpu.memory_space<vmem>>, vector<512x128xf32>
    tpu.vector_store %arg14[%c0_31, %c0_32], %31 {strides = array<i32>} : memref<512x128xf32, #tpu.memory_space<vmem>>, vector<512x128xf32>,
    return
  }
  func.func @transform_0(%arg0: i32) -> (i32, i32) {
    %c0_i32 = arith.constant 0 : i32
    %c0_i32_0 = arith.constant 0 : i32
    return %arg0, %c0_i32 : i32, i32
  }
  func.func @transform_1(%arg0: i32) -> (i32, i32) {
    %c0_i32 = arith.constant 0 : i32
    %c0_i32_0 = arith.constant 0 : i32
    return %arg0, %c0_i32 : i32, i32
  }
  func.func @transform_2(%arg0: i32) -> (i32, i32) {
    %c0_i32 = arith.constant 0 : i32
    %c0_i32_0 = arith.constant 0 : i32
    %c0_i32_1 = arith.constant 0 : i32
    return %c0_i32, %c0_i32_0 : i32, i32
  }
  func.func @transform_3(%arg0: i32) -> (i32, i32) {
    %c0_i32 = arith.constant 0 : i32
    %c0_i32_0 = arith.constant 0 : i32
    %c0_i32_1 = arith.constant 0 : i32
    return %c0_i32, %c0_i32_0 : i32, i32
  }
  func.func @transform_4(%arg0: i32) -> (i32, i32) {
    %c0_i32 = arith.constant 0 : i32
    %c0_i32_0 = arith.constant 0 : i32
    %c0_i32_1 = arith.constant 0 : i32
    return %c0_i32, %c0_i32_0 : i32, i32
  }
  func.func @transform_5(%arg0: i32) -> (i32, i32) {
    %c0_i32 = arith.constant 0 : i32
    %c0_i32_0 = arith.constant 0 : i32
    %c0_i32_1 = arith.constant 0 : i32
    return %c0_i32, %c0_i32_0 : i32, i32
  }
  func.func @transform_6(%arg0: i32) -> (i32, i32) {
    %c0_i32 = arith.constant 0 : i32
    %c0_i32_0 = arith.constant 0 : i32
    %c0_i32_1 = arith.constant 0 : i32
    return %c0_i32, %c0_i32_0 : i32, i32
  }
  func.func @transform_7(%arg0: i32) -> (i32, i32) {
    %c0_i32 = arith.constant 0 : i32
    %c0_i32_0 = arith.constant 0 : i32
    %c0_i32_1 = arith.constant 0 : i32
    return %c0_i32, %c0_i32_0 : i32, i32
  }
  func.func @transform_8(%arg0: i32) -> (i32, i32) {
    %c0_i32 = arith.constant 0 : i32
    %c0_i32_0 = arith.constant 0 : i32
    %c0_i32_1 = arith.constant 0 : i32
    return %c0_i32, %c0_i32_0 : i32, i32
  }
  func.func @transform_9(%arg0: i32) -> (i32, i32) {
    %c0_i32 = arith.constant 0 : i32
    %c0_i32_0 = arith.constant 0 : i32
    %c0_i32_1 = arith.constant 0 : i32
    return %c0_i32, %c0_i32_0 : i32, i32
  }
  func.func @transform_10(%arg0: i32) -> (i32, i32) {
    %c0_i32 = arith.constant 0 : i32
    %c0_i32_0 = arith.constant 0 : i32
    return %arg0, %c0_i32 : i32, i32
  }
  func.func @transform_11(%arg0: i32) -> (i32, i32) {
    %c0_i32 = arith.constant 0 : i32
    %c0_i32_0 = arith.constant 0 : i32
    return %arg0, %c0_i32 : i32, i32
  }
  func.func @transform_12(%arg0: i32) -> (i32, i32) {
    %c0_i32 = arith.constant 0 : i32
    %c0_i32_0 = arith.constant 0 : i32
    return %arg0, %c0_i32 : i32, i32
  }
  func.func @transform_13(%arg0: i32) -> (i32, i32) {
    %c0_i32 = arith.constant 0 : i32
    %c0_i32_0 = arith.constant 0 : i32
    return %arg0, %c0_i32 : i32, i32
  }
}

</mosaic_0001>

<llo_original>
// kernel: tpu_custom_call.1
$region0: #{tpu_custom_call.1}
  #allocation0 [shape = 'u32[]', space=smem, size = 0x4, offset = 0x4, fixed_abs, tag = 'smem constant byte address 0x4 - core index']
  #allocation1 [shape = 'u32[144,128]{1,0:T(1,128)}', space=vmem, size = 0x12000, scoped, tag = 'internal scratch']
  %s0 = inlined_call_operand.vmem [shape: f32[512,32], index: 0, kind: input, shape index: {}]
  %s1 = inlined_call_operand.vmem [shape: f32[512,128], index: 1, kind: input, shape index: {}]
  %s2 = inlined_call_operand.hbm [shape: f32[32,128], index: 2, kind: input, shape index: {}]
  %s3 = inlined_call_operand.hbm [shape: f32[32,128], index: 3, kind: input, shape index: {}]
  %s4 = inlined_call_operand.hbm [shape: f32[32,128], index: 4, kind: input, shape index: {}]
  %s5 = inlined_call_operand.vmem [shape: f32[1,128], index: 5, kind: input, shape index: {}]
  %s6 = inlined_call_operand.vmem [shape: f32[1,128], index: 6, kind: input, shape index: {}]
  %s7 = inlined_call_operand.vmem [shape: f32[1,128], index: 7, kind: input, shape index: {}]
  %s8 = inlined_call_operand.vmem [shape: f32[128,128], index: 8, kind: input, shape index: {}]
  %s9 = inlined_call_operand.vmem [shape: f32[1,128], index: 9, kind: input, shape index: {}]
  %s10 = inlined_call_operand.hbm [shape: f32[512,128], index: 10, kind: output, shape index: {0}]
  %s11 = inlined_call_operand.hbm [shape: f32[512,128], index: 11, kind: output, shape index: {1}]
  %s12 = inlined_call_operand.hbm [shape: f32[512,128], index: 12, kind: output, shape index: {2}]
  %s13 = inlined_call_operand.hbm [shape: f32[512,128], index: 13, kind: output, shape index: {3}]
  %14 = xla_tuple %s10, %s11, %s12, %s13
  %s15 = sld [smem:[#allocation0]]
  $region86: #{tpu_custom_call.1} parent=0
    _
  %s17 = ssub.s32 1, %s15
  %s18 = scalar_select 0, %s17, %s15
  $region1: #{tpu_custom_call.1} parent=0
    #allocation2 [shape = 'u8[16384]{0}', space=vmem, size = 0x4000, scoped, tag = 'input window, operand 2, single buffered']
    #allocation3 [shape = 's32[1]{0}', space=sflag, size = 0x4, scoped, tag = 'scoped memory for tpu_custom_call.1']
    #allocation4 [shape = 's32[1]{0}', space=sflag, size = 0x4, scoped, tag = 'scoped memory for tpu_custom_call.1']
    #allocation5 [shape = 'u8[16384]{0}', space=vmem, size = 0x4000, scoped, tag = 'input window, operand 3, single buffered']
    #allocation6 [shape = 's32[1]{0}', space=sflag, size = 0x4, scoped, tag = 'scoped memory for tpu_custom_call.1']
    #allocation7 [shape = 'u8[16384]{0}', space=vmem, size = 0x4000, scoped, tag = 'input window, operand 4, single buffered']
    #allocation8 [shape = 'u8[262144]{0}', space=vmem, size = 0x40000, scoped, tag = 'output window, operand 0, single buffered']
    #allocation9 [shape = 'u8[262144]{0}', space=vmem, size = 0x40000, scoped, tag = 'output window, operand 1, single buffered']
    #allocation10 [shape = 's32[1]{0}', space=sflag, size = 0x4, scoped, tag = 'scoped memory for tpu_custom_call.1']
    #allocation11 [shape = 'u8[262144]{0}', space=vmem, size = 0x40000, scoped, tag = 'output window, operand 2, single buffered']
    #allocation12 [shape = 'u8[262144]{0}', space=vmem, size = 0x40000, scoped, tag = 'output window, operand 3, single buffered']
    #allocation13 [shape = 's32[1]{0}', space=sflag, size = 0x4, scoped, tag = 'scoped memory for tpu_custom_call.1']
    %19 = vsyncpa [#allocation3], 0
    %20 = vsyncpa [#allocation6], 0
    %21 = vsyncpa [#allocation4], 0
    %22 = vsyncpa [#allocation10], 0
    %23 = vsyncpa [#allocation13], 0
    // Predicated region
    $region2: #{tpu_custom_call.1} parent=1 // pred_check
      _
    $region3: #{tpu_custom_call.1} parent=1 // pred_check_branch
      %25 = sbr.rel (0) target = $region5
    $region4: #{tpu_custom_call.1} parent=1 // pred_region
      _
    $region5: #{tpu_custom_call.1} parent=1 // pred_fallthru
      _
    // Predicated region
    $region6: #{tpu_custom_call.1} parent=1 // pred_check
      _
    $region7: #{tpu_custom_call.1} parent=1 // pred_check_branch
      %27 = sbr.rel (0) target = $region9
    $region8: #{tpu_custom_call.1} parent=1 // pred_region
      _
    $region9: #{tpu_custom_call.1} parent=1 // pred_fallthru
      _
    // Predicated region
    $region10: #{tpu_custom_call.1} parent=1 // pred_check
      _
    $region11: #{tpu_custom_call.1} parent=1 // pred_check_branch
      %29 = sbr.rel (0) target = $region13
    $region12: #{tpu_custom_call.1} parent=1 // pred_region
      %s31 = ssub.s32 512, 512
      %32 = vsyncadd [#allocation3], %s31
      %s33 = sshll.u32 [#allocation2], 4
      %s34 = int_to_ptr.vmem [resolvable:$true] %s33
      %39 = dma.hbm_to_vmem [thread:$0]  %s2, 512, %s34, [#allocation3], 128, 128, 8
    $region13: #{tpu_custom_call.1} parent=1 // pred_fallthru
      _
    // Predicated region
    $region14: #{tpu_custom_call.1} parent=1 // pred_check
      _
    $region15: #{tpu_custom_call.1} parent=1 // pred_check_branch
      %41 = sbr.rel (0) target = $region17
    $region16: #{tpu_custom_call.1} parent=1 // pred_region
      %s43 = ssub.s32 512, 512
      %44 = vsyncadd [#allocation6], %s43
      %s45 = sshll.u32 [#allocation5], 4
      %s46 = int_to_ptr.vmem [resolvable:$true] %s45
      %51 = dma.hbm_to_vmem [thread:$0]  %s3, 512, %s46, [#allocation6], 128, 128, 8
    $region17: #{tpu_custom_call.1} parent=1 // pred_fallthru
      _
    // Predicated region
    $region18: #{tpu_custom_call.1} parent=1 // pred_check
      _
    $region19: #{tpu_custom_call.1} parent=1 // pred_check_branch
      %53 = sbr.rel (0) target = $region21
    $region20: #{tpu_custom_call.1} parent=1 // pred_region
      %s55 = ssub.s32 512, 512
      %56 = vsyncadd [#allocation6], %s55
      %s57 = sshll.u32 [#allocation7], 4
      %s58 = int_to_ptr.vmem [resolvable:$true] %s57
      %63 = dma.hbm_to_vmem [thread:$0]  %s4, 512, %s58, [#allocation6], 128, 128, 8
    $region21: #{tpu_custom_call.1} parent=1 // pred_fallthru
      _
    // Predicated region
    $region22: #{tpu_custom_call.1} parent=1 // pred_check
      _
    $region23: #{tpu_custom_call.1} parent=1 // pred_check_branch
      %65 = sbr.rel (0) target = $region25
    $region24: #{tpu_custom_call.1} parent=1 // pred_region
      _
    $region25: #{tpu_custom_call.1} parent=1 // pred_fallthru
      _
    // Predicated region
    $region26: #{tpu_custom_call.1} parent=1 // pred_check
      _
    $region27: #{tpu_custom_call.1} parent=1 // pred_check_branch
      %67 = sbr.rel (0) target = $region29
    $region28: #{tpu_custom_call.1} parent=1 // pred_region
      _
    $region29: #{tpu_custom_call.1} parent=1 // pred_fallthru
      _
    // Predicated region
    $region30: #{tpu_custom_call.1} parent=1 // pred_check
      _
    $region31: #{tpu_custom_call.1} parent=1 // pred_check_branch
      %69 = sbr.rel (0) target = $region33
    $region32: #{tpu_custom_call.1} parent=1 // pred_region
      _
    $region33: #{tpu_custom_call.1} parent=1 // pred_fallthru
      _
    // Predicated region
    $region34: #{tpu_custom_call.1} parent=1 // pred_check
      _
    $region35: #{tpu_custom_call.1} parent=1 // pred_check_branch
      %71 = sbr.rel (0) target = $region37
    $region36: #{tpu_custom_call.1} parent=1 // pred_region
      _
    $region37: #{tpu_custom_call.1} parent=1 // pred_fallthru
      _
    // Predicated region
    $region38: #{tpu_custom_call.1} parent=1 // pred_check
      _
    $region39: #{tpu_custom_call.1} parent=1 // pred_check_branch
      %73 = sbr.rel (0) target = $region41
    $region40: #{tpu_custom_call.1} parent=1 // pred_region
      _
    $region41: #{tpu_custom_call.1} parent=1 // pred_fallthru
      _
    // Predicated region
    $region42: #{tpu_custom_call.1} parent=1 // pred_check
      _
    $region43: #{tpu_custom_call.1} parent=1 // pred_check_branch
      %75 = sbr.rel (0) target = $region45
    $region44: #{tpu_custom_call.1} parent=1 // pred_region
      %76 = dma.done [#allocation3], 512
    $region45: #{tpu_custom_call.1} parent=1 // pred_fallthru
      _
    // Predicated region
    $region46: #{tpu_custom_call.1} parent=1 // pred_check
      _
    $region47: #{tpu_custom_call.1} parent=1 // pred_check_branch
      %78 = sbr.rel (0) target = $region49
    $region48: #{tpu_custom_call.1} parent=1 // pred_region
      %79 = dma.done [#allocation6], 512
    $region49: #{tpu_custom_call.1} parent=1 // pred_fallthru
      _
    // Predicated region
    $region50: #{tpu_custom_call.1} parent=1 // pred_check
      _
    $region51: #{tpu_custom_call.1} parent=1 // pred_check_branch
      %81 = sbr.rel (0) target = $region53
    $region52: #{tpu_custom_call.1} parent=1 // pred_region
      %82 = dma.done [#allocation6], 512
    $region53: #{tpu_custom_call.1} parent=1 // pred_fallthru
      _
    %v83 = vld [vmem:[%s0] sm:$0xff]
    %v84 = vld [vmem:[%s0 + $0x8] sm:$0xff]
    %v85 = vld [vmem:[%s0 + $0x10] sm:$0xff]
    %v86 = vld [vmem:[%s0 + $0x18] sm:$0xff]
    %v87 = vld [vmem:[%s0 + $0x20] sm:$0xff]
    %v88 = vld [vmem:[%s0 + $0x28] sm:$0xff]
    %v89 = vld [vmem:[%s0 + $0x30] sm:$0xff]
    %v90 = vld [vmem:[%s0 + $0x38] sm:$0xff]
    %v91 = vld [vmem:[%s0 + $0x40] sm:$0xff]
    %v92 = vld [vmem:[%s0 + $0x48] sm:$0xff]
    %v93 = vld [vmem:[%s0 + $0x50] sm:$0xff]
    %v94 = vld [vmem:[%s0 + $0x58] sm:$0xff]
    %v95 = vld [vmem:[%s0 + $0x60] sm:$0xff]
    %v96 = vld [vmem:[%s0 + $0x68] sm:$0xff]
    %v97 = vld [vmem:[%s0 + $0x70] sm:$0xff]
    %v98 = vld [vmem:[%s0 + $0x78] sm:$0xff]
    %v99 = vld [vmem:[%s0 + $0x80] sm:$0xff]
    %v100 = vld [vmem:[%s0 + $0x88] sm:$0xff]
    %v101 = vld [vmem:[%s0 + $0x90] sm:$0xff]
    %v102 = vld [vmem:[%s0 + $0x98] sm:$0xff]
    %v103 = vld [vmem:[%s0 + $0xa0] sm:$0xff]
    %v104 = vld [vmem:[%s0 + $0xa8] sm:$0xff]
    %v105 = vld [vmem:[%s0 + $0xb0] sm:$0xff]
    %v106 = vld [vmem:[%s0 + $0xb8] sm:$0xff]
    %v107 = vld [vmem:[%s0 + $0xc0] sm:$0xff]
    %v108 = vld [vmem:[%s0 + $0xc8] sm:$0xff]
    %v109 = vld [vmem:[%s0 + $0xd0] sm:$0xff]
    %v110 = vld [vmem:[%s0 + $0xd8] sm:$0xff]
    %v111 = vld [vmem:[%s0 + $0xe0] sm:$0xff]
    %v112 = vld [vmem:[%s0 + $0xe8] sm:$0xff]
    %v113 = vld [vmem:[%s0 + $0xf0] sm:$0xff]
    %v114 = vld [vmem:[%s0 + $0xf8] sm:$0xff]
    %v115 = vld [vmem:[%s0 + $0x100] sm:$0xff]
    %v116 = vld [vmem:[%s0 + $0x108] sm:$0xff]
    %v117 = vld [vmem:[%s0 + $0x110] sm:$0xff]
    %v118 = vld [vmem:[%s0 + $0x118] sm:$0xff]
    %v119 = vld [vmem:[%s0 + $0x120] sm:$0xff]
    %v120 = vld [vmem:[%s0 + $0x128] sm:$0xff]
    %v121 = vld [vmem:[%s0 + $0x130] sm:$0xff]
    %v122 = vld [vmem:[%s0 + $0x138] sm:$0xff]
    %v123 = vld [vmem:[%s0 + $0x140] sm:$0xff]
    %v124 = vld [vmem:[%s0 + $0x148] sm:$0xff]
    %v125 = vld [vmem:[%s0 + $0x150] sm:$0xff]
    %v126 = vld [vmem:[%s0 + $0x158] sm:$0xff]
    %v127 = vld [vmem:[%s0 + $0x160] sm:$0xff]
    %v128 = vld [vmem:[%s0 + $0x168] sm:$0xff]
    %v129 = vld [vmem:[%s0 + $0x170] sm:$0xff]
    %v130 = vld [vmem:[%s0 + $0x178] sm:$0xff]
    %v131 = vld [vmem:[%s0 + $0x180] sm:$0xff]
    %v132 = vld [vmem:[%s0 + $0x188] sm:$0xff]
    %v133 = vld [vmem:[%s0 + $0x190] sm:$0xff]
    %v134 = vld [vmem:[%s0 + $0x198] sm:$0xff]
    %v135 = vld [vmem:[%s0 + $0x1a0] sm:$0xff]
    %v136 = vld [vmem:[%s0 + $0x1a8] sm:$0xff]
    %v137 = vld [vmem:[%s0 + $0x1b0] sm:$0xff]
    %v138 = vld [vmem:[%s0 + $0x1b8] sm:$0xff]
    %v139 = vld [vmem:[%s0 + $0x1c0] sm:$0xff]
    %v140 = vld [vmem:[%s0 + $0x1c8] sm:$0xff]
    %v141 = vld [vmem:[%s0 + $0x1d0] sm:$0xff]
    %v142 = vld [vmem:[%s0 + $0x1d8] sm:$0xff]
    %v143 = vld [vmem:[%s0 + $0x1e0] sm:$0xff]
    %v144 = vld [vmem:[%s0 + $0x1e8] sm:$0xff]
    %v145 = vld [vmem:[%s0 + $0x1f0] sm:$0xff]
    %v146 = vld [vmem:[%s0 + $0x1f8] sm:$0xff]
    %v147 = vld [vmem:[#allocation2] sm:$0xff]
    %v148 = vld [vmem:[#allocation2 + $0x8] sm:$0xff]
    %v149 = vld [vmem:[#allocation2 + $0x10] sm:$0xff]
    %v150 = vld [vmem:[#allocation2 + $0x18] sm:$0xff]
    %v151 = vld [vmem:[%s5] sm:$0x1]
    %v153 = vlaneseq
    %v154 = vshrl.u32 %v153, 7
    %v155 = vsub.s32 0, %v154
    %v156 = vrot.slane %v151, %v155
    %vm158 = vcmask 261120
    %v160 = vsel %vm158, %v83, 0
    %v163 = vsel %vm158, %v84, 0
    %v166 = vsel %vm158, %v85, 0
    %v169 = vsel %vm158, %v86, 0
    %v172 = vsel %vm158, %v87, 0
    %v175 = vsel %vm158, %v88, 0
    %v178 = vsel %vm158, %v89, 0
    %v181 = vsel %vm158, %v90, 0
    %v184 = vsel %vm158, %v91, 0
    %v187 = vsel %vm158, %v92, 0
    %v190 = vsel %vm158, %v93, 0
    %v193 = vsel %vm158, %v94, 0
    %v196 = vsel %vm158, %v95, 0
    %v199 = vsel %vm158, %v96, 0
    %v202 = vsel %vm158, %v97, 0
    %v205 = vsel %vm158, %v98, 0
    %v208 = vsel %vm158, %v99, 0
    %v211 = vsel %vm158, %v100, 0
    %v214 = vsel %vm158, %v101, 0
    %v217 = vsel %vm158, %v102, 0
    %v220 = vsel %vm158, %v103, 0
    %v223 = vsel %vm158, %v104, 0
    %v226 = vsel %vm158, %v105, 0
    %v229 = vsel %vm158, %v106, 0
    %v232 = vsel %vm158, %v107, 0
    %v235 = vsel %vm158, %v108, 0
    %v238 = vsel %vm158, %v109, 0
    %v241 = vsel %vm158, %v110, 0
    %v244 = vsel %vm158, %v111, 0
    %v247 = vsel %vm158, %v112, 0
    %v250 = vsel %vm158, %v113, 0
    %v253 = vsel %vm158, %v114, 0
    %v256 = vsel %vm158, %v115, 0
    %v259 = vsel %vm158, %v116, 0
    %v262 = vsel %vm158, %v117, 0
    %v265 = vsel %vm158, %v118, 0
    %v268 = vsel %vm158, %v119, 0
    %v271 = vsel %vm158, %v120, 0
    %v274 = vsel %vm158, %v121, 0
    %v277 = vsel %vm158, %v122, 0
    %v280 = vsel %vm158, %v123, 0
    %v283 = vsel %vm158, %v124, 0
    %v286 = vsel %vm158, %v125, 0
    %v289 = vsel %vm158, %v126, 0
    %v292 = vsel %vm158, %v127, 0
    %v295 = vsel %vm158, %v128, 0
    %v298 = vsel %vm158, %v129, 0
    %v301 = vsel %vm158, %v130, 0
    %v304 = vsel %vm158, %v131, 0
    %v307 = vsel %vm158, %v132, 0
    %v310 = vsel %vm158, %v133, 0
    %v313 = vsel %vm158, %v134, 0
    %v316 = vsel %vm158, %v135, 0
    %v319 = vsel %vm158, %v136, 0
    %v322 = vsel %vm158, %v137, 0
    %v325 = vsel %vm158, %v138, 0
    %v328 = vsel %vm158, %v139, 0
    %v331 = vsel %vm158, %v140, 0
    %v334 = vsel %vm158, %v141, 0
    %v337 = vsel %vm158, %v142, 0
    %v340 = vsel %vm158, %v143, 0
    %v343 = vsel %vm158, %v144, 0
    %v346 = vsel %vm158, %v145, 0
    %v349 = vsel %vm158, %v146, 0
    %351 = vmatprep.subr.mxu0 0.0
    %352 = vmatpush1.msra.mxu0 0.0
    %353 = vmatprep.subr.mxu0 0.0
    %354 = vmatpush1.msra.mxu0 0.0
    %355 = vmatprep.subr.mxu0 0.0
    %356 = vmatpush1.msra.mxu0 0.0
    %357 = vmatprep.subr.mxu0 0.0
    %358 = vmatpush1.msra.mxu0 0.0
    %359 = vmatprep.subr.mxu0 0.0
    %360 = vmatpush1.msra.mxu0 0.0
    %361 = vmatprep.subr.mxu0 0.0
    %362 = vmatpush1.msra.mxu0 0.0
    %363 = vmatprep.subr.mxu0 0.0
    %364 = vmatpush1.msra.mxu0 0.0
    %365 = vmatprep.subr.mxu0 0.0
    %366 = vmatpush1.msra.mxu0 0.0
    %367 = vmatprep.subr.mxu0 0.0
    %368 = vmatpush1.msra.mxu0 0.0
    %369 = vmatprep.subr.mxu0 0.0
    %370 = vmatpush1.msra.mxu0 0.0
    %371 = vmatprep.subr.mxu0 0.0
    %372 = vmatpush1.msra.mxu0 0.0
    %373 = vmatprep.subr.mxu0 0.0
    %374 = vmatpush1.msra.mxu0 0.0
    %375 = vmatprep.subr.mxu0 0.0
    %376 = vmatpush1.msra.mxu0 %v150
    %377 = vmatprep.subr.mxu0 0.0
    %378 = vmatpush1.msra.mxu0 %v149
    %379 = vmatprep.subr.mxu0 0.0
    %380 = vmatpush1.msra.mxu0 %v148
    %381 = vmatprep.subr.mxu0 0.0
    %382 = vmatpush1.msra.mxu0 %v147
    %383 = vmatprep.subr.mxu0 0.0
    %384 = vmatpush2.msra.mxu0 0.0
    %385 = vmatprep.subr.mxu0 0.0
    %386 = vmatpush2.msra.mxu0 0.0
    %387 = vmatprep.subr.mxu0 0.0
    %388 = vmatpush2.msra.mxu0 0.0
    %389 = vmatprep.subr.mxu0 0.0
    %390 = vmatpush2.msra.mxu0 0.0
    %391 = vmatprep.subr.mxu0 0.0
    %392 = vmatpush2.msra.mxu0 0.0
    %393 = vmatprep.subr.mxu0 0.0
    %394 = vmatpush2.msra.mxu0 0.0
    %395 = vmatprep.subr.mxu0 0.0
    %396 = vmatpush2.msra.mxu0 0.0
    %397 = vmatprep.subr.mxu0 0.0
    %398 = vmatpush2.msra.mxu0 0.0
    %399 = vmatprep.subr.mxu0 0.0
    %400 = vmatpush2.msra.mxu0 0.0
    %401 = vmatprep.subr.mxu0 0.0
    %402 = vmatpush2.msra.mxu0 0.0
    %403 = vmatprep.subr.mxu0 0.0
    %404 = vmatpush2.msra.mxu0 0.0
    %405 = vmatprep.subr.mxu0 0.0
    %406 = vmatpush2.msra.mxu0 0.0
    %407 = vmatprep.subr.mxu0 0.0
    %408 = vmatpush2.msra.mxu0 0.0
    %409 = vmatprep.subr.mxu0 0.0
    %410 = vmatpush2.msra.mxu0 0.0
    %411 = vmatprep.subr.mxu0 0.0
    %412 = vmatpush2.msra.mxu0 0.0
    %413 = vmatprep.subr.mxu0 0.0
    %414 = vmatpush2.msra.mxu0 0.0
    %415 = vmatprep.mubr.f32.mxu0 0.0
    %416 = vmatmul.mubr.f32.gmra.mxu0 %v160
    %v417 = vpop.f32.mrf.mxu0
    %v418 = vadd.f32 %v156, %v417
    %v419 = vpop.f32.mrf.mxu0
    %420 = vmatprep.mubr.f32.mxu0 0.0
    %421 = vmatmul.mubr.f32.gmra.mxu0 %v163
    %v422 = vpop.f32.mrf.mxu0
    %v423 = vadd.f32 %v156, %v422
    %v424 = vpop.f32.mrf.mxu0
    %425 = vmatprep.mubr.f32.mxu0 0.0
    %426 = vmatmul.mubr.f32.gmra.mxu0 %v166
    %v427 = vpop.f32.mrf.mxu0
    %v428 = vadd.f32 %v156, %v427
    %v429 = vpop.f32.mrf.mxu0
    %430 = vmatprep.mubr.f32.mxu0 0.0
    %431 = vmatmul.mubr.f32.gmra.mxu0 %v169
    %v432 = vpop.f32.mrf.mxu0
    %v433 = vadd.f32 %v156, %v432
    %v434 = vpop.f32.mrf.mxu0
    %435 = vmatprep.mubr.f32.mxu0 0.0
    %436 = vmatmul.mubr.f32.gmra.mxu0 %v172
    %v437 = vpop.f32.mrf.mxu0
    %v438 = vadd.f32 %v156, %v437
    %v439 = vpop.f32.mrf.mxu0
    %440 = vmatprep.mubr.f32.mxu0 0.0
    %441 = vmatmul.mubr.f32.gmra.mxu0 %v175
    %v442 = vpop.f32.mrf.mxu0
    %v443 = vadd.f32 %v156, %v442
    %v444 = vpop.f32.mrf.mxu0
    %445 = vmatprep.mubr.f32.mxu0 0.0
    %446 = vmatmul.mubr.f32.gmra.mxu0 %v178
    %v447 = vpop.f32.mrf.mxu0
    %v448 = vadd.f32 %v156, %v447
    %v449 = vpop.f32.mrf.mxu0
    %450 = vmatprep.mubr.f32.mxu0 0.0
    %451 = vmatmul.mubr.f32.gmra.mxu0 %v181
    %v452 = vpop.f32.mrf.mxu0
    %v453 = vadd.f32 %v156, %v452
    %v454 = vpop.f32.mrf.mxu0
    %455 = vmatprep.mubr.f32.mxu0 0.0
    %456 = vmatmul.mubr.f32.gmra.mxu0 %v184
    %v457 = vpop.f32.mrf.mxu0
    %v458 = vadd.f32 %v156, %v457
    %v459 = vpop.f32.mrf.mxu0
    %460 = vmatprep.mubr.f32.mxu0 0.0
    %461 = vmatmul.mubr.f32.gmra.mxu0 %v187
    %v462 = vpop.f32.mrf.mxu0
    %v463 = vadd.f32 %v156, %v462
    %v464 = vpop.f32.mrf.mxu0
    %465 = vmatprep.mubr.f32.mxu0 0.0
    %466 = vmatmul.mubr.f32.gmra.mxu0 %v190
    %v467 = vpop.f32.mrf.mxu0
    %v468 = vadd.f32 %v156, %v467
    %v469 = vpop.f32.mrf.mxu0
    %470 = vmatprep.mubr.f32.mxu0 0.0
    %471 = vmatmul.mubr.f32.gmra.mxu0 %v193
    %v472 = vpop.f32.mrf.mxu0
    %v473 = vadd.f32 %v156, %v472
    %v474 = vpop.f32.mrf.mxu0
    %475 = vmatprep.mubr.f32.mxu0 0.0
    %476 = vmatmul.mubr.f32.gmra.mxu0 %v196
    %v477 = vpop.f32.mrf.mxu0
    %v478 = vadd.f32 %v156, %v477
    %v479 = vpop.f32.mrf.mxu0
    %480 = vmatprep.mubr.f32.mxu0 0.0
    %481 = vmatmul.mubr.f32.gmra.mxu0 %v199
    %v482 = vpop.f32.mrf.mxu0
    %v483 = vadd.f32 %v156, %v482
    %v484 = vpop.f32.mrf.mxu0
    %485 = vmatprep.mubr.f32.mxu0 0.0
    %486 = vmatmul.mubr.f32.gmra.mxu0 %v202
    %v487 = vpop.f32.mrf.mxu0
    %v488 = vadd.f32 %v156, %v487
    %v489 = vpop.f32.mrf.mxu0
    %490 = vmatprep.mubr.f32.mxu0 0.0
    %491 = vmatmul.mubr.f32.gmra.mxu0 %v205
    %v492 = vpop.f32.mrf.mxu0
    %v493 = vadd.f32 %v156, %v492
    %v494 = vpop.f32.mrf.mxu0
    %495 = vmatprep.mubr.f32.mxu0 0.0
    %496 = vmatmul.mubr.f32.gmra.mxu0 %v208
    %v497 = vpop.f32.mrf.mxu0
    %v498 = vadd.f32 %v156, %v497
    %v499 = vpop.f32.mrf.mxu0
    %500 = vmatprep.mubr.f32.mxu0 0.0
    %501 = vmatmul.mubr.f32.gmra.mxu0 %v211
    %v502 = vpop.f32.mrf.mxu0
    %v503 = vadd.f32 %v156, %v502
    %v504 = vpop.f32.mrf.mxu0
    %505 = vmatprep.mubr.f32.mxu0 0.0
    %506 = vmatmul.mubr.f32.gmra.mxu0 %v214
    %v507 = vpop.f32.mrf.mxu0
    %v508 = vadd.f32 %v156, %v507
    %v509 = vpop.f32.mrf.mxu0
    %510 = vmatprep.mubr.f32.mxu0 0.0
    %511 = vmatmul.mubr.f32.gmra.mxu0 %v217
    %v512 = vpop.f32.mrf.mxu0
    %v513 = vadd.f32 %v156, %v512
    %v514 = vpop.f32.mrf.mxu0
    %515 = vmatprep.mubr.f32.mxu0 0.0
    %516 = vmatmul.mubr.f32.gmra.mxu0 %v220
    %v517 = vpop.f32.mrf.mxu0
    %v518 = vadd.f32 %v156, %v517
    %v519 = vpop.f32.mrf.mxu0
    %520 = vmatprep.mubr.f32.mxu0 0.0
    %521 = vmatmul.mubr.f32.gmra.mxu0 %v223
    %v522 = vpop.f32.mrf.mxu0
    %v523 = vadd.f32 %v156, %v522
    %v524 = vpop.f32.mrf.mxu0
    %525 = vmatprep.mubr.f32.mxu0 0.0
    %526 = vmatmul.mubr.f32.gmra.mxu0 %v226
    %v527 = vpop.f32.mrf.mxu0
    %v528 = vadd.f32 %v156, %v527
    %v529 = vpop.f32.mrf.mxu0
    %530 = vmatprep.mubr.f32.mxu0 0.0
    %531 = vmatmul.mubr.f32.gmra.mxu0 %v229
    %v532 = vpop.f32.mrf.mxu0
    %v533 = vadd.f32 %v156, %v532
    %v534 = vpop.f32.mrf.mxu0
    %535 = vmatprep.mubr.f32.mxu0 0.0
    %536 = vmatmul.mubr.f32.gmra.mxu0 %v232
    %v537 = vpop.f32.mrf.mxu0
    %v538 = vadd.f32 %v156, %v537
    %v539 = vpop.f32.mrf.mxu0
    %540 = vmatprep.mubr.f32.mxu0 0.0
    %541 = vmatmul.mubr.f32.gmra.mxu0 %v235
    %v542 = vpop.f32.mrf.mxu0
    %v543 = vadd.f32 %v156, %v542
    %v544 = vpop.f32.mrf.mxu0
    %545 = vmatprep.mubr.f32.mxu0 0.0
    %546 = vmatmul.mubr.f32.gmra.mxu0 %v238
    %v547 = vpop.f32.mrf.mxu0
    %v548 = vadd.f32 %v156, %v547
    %v549 = vpop.f32.mrf.mxu0
    %550 = vmatprep.mubr.f32.mxu0 0.0
    %551 = vmatmul.mubr.f32.gmra.mxu0 %v241
    %v552 = vpop.f32.mrf.mxu0
    %v553 = vadd.f32 %v156, %v552
    %v554 = vpop.f32.mrf.mxu0
    %555 = vmatprep.mubr.f32.mxu0 0.0
    %556 = vmatmul.mubr.f32.gmra.mxu0 %v244
    %v557 = vpop.f32.mrf.mxu0
    %v558 = vadd.f32 %v156, %v557
    %v559 = vpop.f32.mrf.mxu0
    %560 = vmatprep.mubr.f32.mxu0 0.0
    %561 = vmatmul.mubr.f32.gmra.mxu0 %v247
    %v562 = vpop.f32.mrf.mxu0
    %v563 = vadd.f32 %v156, %v562
    %v564 = vpop.f32.mrf.mxu0
    %565 = vmatprep.mubr.f32.mxu0 0.0
    %566 = vmatmul.mubr.f32.gmra.mxu0 %v250
    %v567 = vpop.f32.mrf.mxu0
    %v568 = vadd.f32 %v156, %v567
    %v569 = vpop.f32.mrf.mxu0
    %570 = vmatprep.mubr.f32.mxu0 0.0
    %571 = vmatmul.mubr.f32.gmra.mxu0 %v253
    %v572 = vpop.f32.mrf.mxu0
    %v573 = vadd.f32 %v156, %v572
    %v574 = vpop.f32.mrf.mxu0
    %575 = vmatprep.mubr.f32.mxu0 0.0
    %576 = vmatmul.mubr.f32.gmra.mxu0 %v256
    %v577 = vpop.f32.mrf.mxu0
    %v578 = vadd.f32 %v156, %v577
    %v579 = vpop.f32.mrf.mxu0
    %580 = vmatprep.mubr.f32.mxu0 0.0
    %581 = vmatmul.mubr.f32.gmra.mxu0 %v259
    %v582 = vpop.f32.mrf.mxu0
    %v583 = vadd.f32 %v156, %v582
    %v584 = vpop.f32.mrf.mxu0
    %585 = vmatprep.mubr.f32.mxu0 0.0
    %586 = vmatmul.mubr.f32.gmra.mxu0 %v262
    %v587 = vpop.f32.mrf.mxu0
    %v588 = vadd.f32 %v156, %v587
    %v589 = vpop.f32.mrf.mxu0
    %590 = vmatprep.mubr.f32.mxu0 0.0
    %591 = vmatmul.mubr.f32.gmra.mxu0 %v265
    %v592 = vpop.f32.mrf.mxu0
    %v593 = vadd.f32 %v156, %v592
    %v594 = vpop.f32.mrf.mxu0
    %595 = vmatprep.mubr.f32.mxu0 0.0
    %596 = vmatmul.mubr.f32.gmra.mxu0 %v268
    %v597 = vpop.f32.mrf.mxu0
    %v598 = vadd.f32 %v156, %v597
    %v599 = vpop.f32.mrf.mxu0
    %600 = vmatprep.mubr.f32.mxu0 0.0
    %601 = vmatmul.mubr.f32.gmra.mxu0 %v271
    %v602 = vpop.f32.mrf.mxu0
    %v603 = vadd.f32 %v156, %v602
    %v604 = vpop.f32.mrf.mxu0
    %605 = vmatprep.mubr.f32.mxu0 0.0
    %606 = vmatmul.mubr.f32.gmra.mxu0 %v274
    %v607 = vpop.f32.mrf.mxu0
    %v608 = vadd.f32 %v156, %v607
    %v609 = vpop.f32.mrf.mxu0
    %610 = vmatprep.mubr.f32.mxu0 0.0
    %611 = vmatmul.mubr.f32.gmra.mxu0 %v277
    %v612 = vpop.f32.mrf.mxu0
    %v613 = vadd.f32 %v156, %v612
    %v614 = vpop.f32.mrf.mxu0
    %615 = vmatprep.mubr.f32.mxu0 0.0
    %616 = vmatmul.mubr.f32.gmra.mxu0 %v280
    %v617 = vpop.f32.mrf.mxu0
    %v618 = vadd.f32 %v156, %v617
    %v619 = vpop.f32.mrf.mxu0
    %620 = vmatprep.mubr.f32.mxu0 0.0
    %621 = vmatmul.mubr.f32.gmra.mxu0 %v283
    %v622 = vpop.f32.mrf.mxu0
    %v623 = vadd.f32 %v156, %v622
    %v624 = vpop.f32.mrf.mxu0
    %625 = vmatprep.mubr.f32.mxu0 0.0
    %626 = vmatmul.mubr.f32.gmra.mxu0 %v286
    %v627 = vpop.f32.mrf.mxu0
    %v628 = vadd.f32 %v156, %v627
    %v629 = vpop.f32.mrf.mxu0
    %630 = vmatprep.mubr.f32.mxu0 0.0
    %631 = vmatmul.mubr.f32.gmra.mxu0 %v289
    %v632 = vpop.f32.mrf.mxu0
    %v633 = vadd.f32 %v156, %v632
    %v634 = vpop.f32.mrf.mxu0
    %635 = vmatprep.mubr.f32.mxu0 0.0
    %636 = vmatmul.mubr.f32.gmra.mxu0 %v292
    %v637 = vpop.f32.mrf.mxu0
    %v638 = vadd.f32 %v156, %v637
    %v639 = vpop.f32.mrf.mxu0
    %640 = vmatprep.mubr.f32.mxu0 0.0
    %641 = vmatmul.mubr.f32.gmra.mxu0 %v295
    %v642 = vpop.f32.mrf.mxu0
    %v643 = vadd.f32 %v156, %v642
    %v644 = vpop.f32.mrf.mxu0
    %645 = vmatprep.mubr.f32.mxu0 0.0
    %646 = vmatmul.mubr.f32.gmra.mxu0 %v298
    %v647 = vpop.f32.mrf.mxu0
    %v648 = vadd.f32 %v156, %v647
    %v649 = vpop.f32.mrf.mxu0
    %650 = vmatprep.mubr.f32.mxu0 0.0
    %651 = vmatmul.mubr.f32.gmra.mxu0 %v301
    %v652 = vpop.f32.mrf.mxu0
    %v653 = vadd.f32 %v156, %v652
    %v654 = vpop.f32.mrf.mxu0
    %655 = vmatprep.mubr.f32.mxu0 0.0
    %656 = vmatmul.mubr.f32.gmra.mxu0 %v304
    %v657 = vpop.f32.mrf.mxu0
    %v658 = vadd.f32 %v156, %v657
    %v659 = vpop.f32.mrf.mxu0
    %660 = vmatprep.mubr.f32.mxu0 0.0
    %661 = vmatmul.mubr.f32.gmra.mxu0 %v307
    %v662 = vpop.f32.mrf.mxu0
    %v663 = vadd.f32 %v156, %v662
    %v664 = vpop.f32.mrf.mxu0
    %665 = vmatprep.mubr.f32.mxu0 0.0
    %666 = vmatmul.mubr.f32.gmra.mxu0 %v310
    %v667 = vpop.f32.mrf.mxu0
    %v668 = vadd.f32 %v156, %v667
    %v669 = vpop.f32.mrf.mxu0
    %670 = vmatprep.mubr.f32.mxu0 0.0
    %671 = vmatmul.mubr.f32.gmra.mxu0 %v313
    %v672 = vpop.f32.mrf.mxu0
    %v673 = vadd.f32 %v156, %v672
    %v674 = vpop.f32.mrf.mxu0
    %675 = vmatprep.mubr.f32.mxu0 0.0
    %676 = vmatmul.mubr.f32.gmra.mxu0 %v316
    %v677 = vpop.f32.mrf.mxu0
    %v678 = vadd.f32 %v156, %v677
    %v679 = vpop.f32.mrf.mxu0
    %680 = vmatprep.mubr.f32.mxu0 0.0
    %681 = vmatmul.mubr.f32.gmra.mxu0 %v319
    %v682 = vpop.f32.mrf.mxu0
    %v683 = vadd.f32 %v156, %v682
    %v684 = vpop.f32.mrf.mxu0
    %685 = vmatprep.mubr.f32.mxu0 0.0
    %686 = vmatmul.mubr.f32.gmra.mxu0 %v322
    %v687 = vpop.f32.mrf.mxu0
    %v688 = vadd.f32 %v156, %v687
    %v689 = vpop.f32.mrf.mxu0
    %690 = vmatprep.mubr.f32.mxu0 0.0
    %691 = vmatmul.mubr.f32.gmra.mxu0 %v325
    %v692 = vpop.f32.mrf.mxu0
    %v693 = vadd.f32 %v156, %v692
    %v694 = vpop.f32.mrf.mxu0
    %695 = vmatprep.mubr.f32.mxu0 0.0
    %696 = vmatmul.mubr.f32.gmra.mxu0 %v328
    %v697 = vpop.f32.mrf.mxu0
    %v698 = vadd.f32 %v156, %v697
    %v699 = vpop.f32.mrf.mxu0
    %700 = vmatprep.mubr.f32.mxu0 0.0
    %701 = vmatmul.mubr.f32.gmra.mxu0 %v331
    %v702 = vpop.f32.mrf.mxu0
    %v703 = vadd.f32 %v156, %v702
    %v704 = vpop.f32.mrf.mxu0
    %705 = vmatprep.mubr.f32.mxu0 0.0
    %706 = vmatmul.mubr.f32.gmra.mxu0 %v334
    %v707 = vpop.f32.mrf.mxu0
    %v708 = vadd.f32 %v156, %v707
    %v709 = vpop.f32.mrf.mxu0
    %710 = vmatprep.mubr.f32.mxu0 0.0
    %711 = vmatmul.mubr.f32.gmra.mxu0 %v337
    %v712 = vpop.f32.mrf.mxu0
    %v713 = vadd.f32 %v156, %v712
    %v714 = vpop.f32.mrf.mxu0
    %715 = vmatprep.mubr.f32.mxu0 0.0
    %716 = vmatmul.mubr.f32.gmra.mxu0 %v340
    %v717 = vpop.f32.mrf.mxu0
    %v718 = vadd.f32 %v156, %v717
    %v719 = vpop.f32.mrf.mxu0
    %720 = vmatprep.mubr.f32.mxu0 0.0
    %721 = vmatmul.mubr.f32.gmra.mxu0 %v343
    %v722 = vpop.f32.mrf.mxu0
    %v723 = vadd.f32 %v156, %v722
    %v724 = vpop.f32.mrf.mxu0
    %725 = vmatprep.mubr.f32.mxu0 0.0
    %726 = vmatmul.mubr.f32.gmra.mxu0 %v346
    %v727 = vpop.f32.mrf.mxu0
    %v728 = vadd.f32 %v156, %v727
    %v729 = vpop.f32.mrf.mxu0
    %730 = vmatprep.mubr.f32.mxu0 0.0
    %731 = vmatmul.mubr.f32.gmra.mxu0 %v349
    %v732 = vpop.f32.mrf.mxu0
    %v733 = vadd.f32 %v156, %v732
    %v734 = vpop.f32.mrf.mxu0
    %735 = vdwg.mxu0
    %v736 = vld [vmem:[#allocation5] sm:$0xff]
    %v737 = vld [vmem:[#allocation5 + $0x8] sm:$0xff]
    %v738 = vld [vmem:[#allocation5 + $0x10] sm:$0xff]
    %v739 = vld [vmem:[#allocation5 + $0x18] sm:$0xff]
    %v740 = vld [vmem:[%s6] sm:$0x1]
    %v742 = vlaneseq
    %v743 = vshrl.u32 %v742, 7
    %v744 = vsub.s32 0, %v743
    %v745 = vrot.slane %v740, %v744
    %747 = vmatprep.subr.mxu0 0.0
    %748 = vmatpush1.msra.mxu0 0.0
    %749 = vmatprep.subr.mxu0 0.0
    %750 = vmatpush1.msra.mxu0 0.0
    %751 = vmatprep.subr.mxu0 0.0
    %752 = vmatpush1.msra.mxu0 0.0
    %753 = vmatprep.subr.mxu0 0.0
    %754 = vmatpush1.msra.mxu0 0.0
    %755 = vmatprep.subr.mxu0 0.0
    %756 = vmatpush1.msra.mxu0 0.0
    %757 = vmatprep.subr.mxu0 0.0
    %758 = vmatpush1.msra.mxu0 0.0
    %759 = vmatprep.subr.mxu0 0.0
    %760 = vmatpush1.msra.mxu0 0.0
    %761 = vmatprep.subr.mxu0 0.0
    %762 = vmatpush1.msra.mxu0 0.0
    %763 = vmatprep.subr.mxu0 0.0
    %764 = vmatpush1.msra.mxu0 0.0
    %765 = vmatprep.subr.mxu0 0.0
    %766 = vmatpush1.msra.mxu0 0.0
    %767 = vmatprep.subr.mxu0 0.0
    %768 = vmatpush1.msra.mxu0 0.0
    %769 = vmatprep.subr.mxu0 0.0
    %770 = vmatpush1.msra.mxu0 0.0
    %771 = vmatprep.subr.mxu0 0.0
    %772 = vmatpush1.msra.mxu0 %v739
    %773 = vmatprep.subr.mxu0 0.0
    %774 = vmatpush1.msra.mxu0 %v738
    %775 = vmatprep.subr.mxu0 0.0
    %776 = vmatpush1.msra.mxu0 %v737
    %777 = vmatprep.subr.mxu0 0.0
    %778 = vmatpush1.msra.mxu0 %v736
    %779 = vmatprep.subr.mxu0 0.0
    %780 = vmatpush2.msra.mxu0 0.0
    %781 = vmatprep.subr.mxu0 0.0
    %782 = vmatpush2.msra.mxu0 0.0
    %783 = vmatprep.subr.mxu0 0.0
    %784 = vmatpush2.msra.mxu0 0.0
    %785 = vmatprep.subr.mxu0 0.0
    %786 = vmatpush2.msra.mxu0 0.0
    %787 = vmatprep.subr.mxu0 0.0
    %788 = vmatpush2.msra.mxu0 0.0
    %789 = vmatprep.subr.mxu0 0.0
    %790 = vmatpush2.msra.mxu0 0.0
    %791 = vmatprep.subr.mxu0 0.0
    %792 = vmatpush2.msra.mxu0 0.0
    %793 = vmatprep.subr.mxu0 0.0
    %794 = vmatpush2.msra.mxu0 0.0
    %795 = vmatprep.subr.mxu0 0.0
    %796 = vmatpush2.msra.mxu0 0.0
    %797 = vmatprep.subr.mxu0 0.0
    %798 = vmatpush2.msra.mxu0 0.0
    %799 = vmatprep.subr.mxu0 0.0
    %800 = vmatpush2.msra.mxu0 0.0
    %801 = vmatprep.subr.mxu0 0.0
    %802 = vmatpush2.msra.mxu0 0.0
    %803 = vmatprep.subr.mxu0 0.0
    %804 = vmatpush2.msra.mxu0 0.0
    %805 = vmatprep.subr.mxu0 0.0
    %806 = vmatpush2.msra.mxu0 0.0
    %807 = vmatprep.subr.mxu0 0.0
    %808 = vmatpush2.msra.mxu0 0.0
    %809 = vmatprep.subr.mxu0 0.0
    %810 = vmatpush2.msra.mxu0 0.0
    %811 = vmatprep.mubr.f32.mxu0 0.0
    %812 = vmatmul.mubr.f32.gmra.mxu0 %v160
    %v813 = vpop.f32.mrf.mxu0
    %v814 = vadd.f32 %v745, %v813
    %v815 = vpop.f32.mrf.mxu0
    %816 = vmatprep.mubr.f32.mxu0 0.0
    %817 = vmatmul.mubr.f32.gmra.mxu0 %v163
    %v818 = vpop.f32.mrf.mxu0
    %v819 = vadd.f32 %v745, %v818
    %v820 = vpop.f32.mrf.mxu0
    %821 = vmatprep.mubr.f32.mxu0 0.0
    %822 = vmatmul.mubr.f32.gmra.mxu0 %v166
    %v823 = vpop.f32.mrf.mxu0
    %v824 = vadd.f32 %v745, %v823
    %v825 = vpop.f32.mrf.mxu0
    %826 = vmatprep.mubr.f32.mxu0 0.0
    %827 = vmatmul.mubr.f32.gmra.mxu0 %v169
    %v828 = vpop.f32.mrf.mxu0
    %v829 = vadd.f32 %v745, %v828
    %v830 = vpop.f32.mrf.mxu0
    %831 = vmatprep.mubr.f32.mxu0 0.0
    %832 = vmatmul.mubr.f32.gmra.mxu0 %v172
    %v833 = vpop.f32.mrf.mxu0
    %v834 = vadd.f32 %v745, %v833
    %v835 = vpop.f32.mrf.mxu0
    %836 = vmatprep.mubr.f32.mxu0 0.0
    %837 = vmatmul.mubr.f32.gmra.mxu0 %v175
    %v838 = vpop.f32.mrf.mxu0
    %v839 = vadd.f32 %v745, %v838
    %v840 = vpop.f32.mrf.mxu0
    %841 = vmatprep.mubr.f32.mxu0 0.0
    %842 = vmatmul.mubr.f32.gmra.mxu0 %v178
    %v843 = vpop.f32.mrf.mxu0
    %v844 = vadd.f32 %v745, %v843
    %v845 = vpop.f32.mrf.mxu0
    %846 = vmatprep.mubr.f32.mxu0 0.0
    %847 = vmatmul.mubr.f32.gmra.mxu0 %v181
    %v848 = vpop.f32.mrf.mxu0
    %v849 = vadd.f32 %v745, %v848
    %v850 = vpop.f32.mrf.mxu0
    %851 = vmatprep.mubr.f32.mxu0 0.0
    %852 = vmatmul.mubr.f32.gmra.mxu0 %v184
    %v853 = vpop.f32.mrf.mxu0
    %v854 = vadd.f32 %v745, %v853
    %v855 = vpop.f32.mrf.mxu0
    %856 = vmatprep.mubr.f32.mxu0 0.0
    %857 = vmatmul.mubr.f32.gmra.mxu0 %v187
    %v858 = vpop.f32.mrf.mxu0
    %v859 = vadd.f32 %v745, %v858
    %v860 = vpop.f32.mrf.mxu0
    %861 = vmatprep.mubr.f32.mxu0 0.0
    %862 = vmatmul.mubr.f32.gmra.mxu0 %v190
    %v863 = vpop.f32.mrf.mxu0
    %v864 = vadd.f32 %v745, %v863
    %v865 = vpop.f32.mrf.mxu0
    %866 = vmatprep.mubr.f32.mxu0 0.0
    %867 = vmatmul.mubr.f32.gmra.mxu0 %v193
    %v868 = vpop.f32.mrf.mxu0
    %v869 = vadd.f32 %v745, %v868
    %v870 = vpop.f32.mrf.mxu0
    %871 = vmatprep.mubr.f32.mxu0 0.0
    %872 = vmatmul.mubr.f32.gmra.mxu0 %v196
    %v873 = vpop.f32.mrf.mxu0
    %v874 = vadd.f32 %v745, %v873
    %v875 = vpop.f32.mrf.mxu0
    %876 = vmatprep.mubr.f32.mxu0 0.0
    %877 = vmatmul.mubr.f32.gmra.mxu0 %v199
    %v878 = vpop.f32.mrf.mxu0
    %v879 = vadd.f32 %v745, %v878
    %v880 = vpop.f32.mrf.mxu0
    %881 = vmatprep.mubr.f32.mxu0 0.0
    %882 = vmatmul.mubr.f32.gmra.mxu0 %v202
    %v883 = vpop.f32.mrf.mxu0
    %v884 = vadd.f32 %v745, %v883
    %v885 = vpop.f32.mrf.mxu0
    %886 = vmatprep.mubr.f32.mxu0 0.0
    %887 = vmatmul.mubr.f32.gmra.mxu0 %v205
    %v888 = vpop.f32.mrf.mxu0
    %v889 = vadd.f32 %v745, %v888
    %v890 = vpop.f32.mrf.mxu0
    %891 = vmatprep.mubr.f32.mxu0 0.0
    %892 = vmatmul.mubr.f32.gmra.mxu0 %v208
    %v893 = vpop.f32.mrf.mxu0
    %v894 = vadd.f32 %v745, %v893
    %v895 = vpop.f32.mrf.mxu0
    %896 = vmatprep.mubr.f32.mxu0 0.0
    %897 = vmatmul.mubr.f32.gmra.mxu0 %v211
    %v898 = vpop.f32.mrf.mxu0
    %v899 = vadd.f32 %v745, %v898
    %v900 = vpop.f32.mrf.mxu0
    %901 = vmatprep.mubr.f32.mxu0 0.0
    %902 = vmatmul.mubr.f32.gmra.mxu0 %v214
    %v903 = vpop.f32.mrf.mxu0
    %v904 = vadd.f32 %v745, %v903
    %v905 = vpop.f32.mrf.mxu0
    %906 = vmatprep.mubr.f32.mxu0 0.0
    %907 = vmatmul.mubr.f32.gmra.mxu0 %v217
    %v908 = vpop.f32.mrf.mxu0
    %v909 = vadd.f32 %v745, %v908
    %v910 = vpop.f32.mrf.mxu0
    %911 = vmatprep.mubr.f32.mxu0 0.0
    %912 = vmatmul.mubr.f32.gmra.mxu0 %v220
    %v913 = vpop.f32.mrf.mxu0
    %v914 = vadd.f32 %v745, %v913
    %v915 = vpop.f32.mrf.mxu0
    %916 = vmatprep.mubr.f32.mxu0 0.0
    %917 = vmatmul.mubr.f32.gmra.mxu0 %v223
    %v918 = vpop.f32.mrf.mxu0
    %v919 = vadd.f32 %v745, %v918
    %v920 = vpop.f32.mrf.mxu0
    %921 = vmatprep.mubr.f32.mxu0 0.0
    %922 = vmatmul.mubr.f32.gmra.mxu0 %v226
    %v923 = vpop.f32.mrf.mxu0
    %v924 = vadd.f32 %v745, %v923
    %v925 = vpop.f32.mrf.mxu0
    %926 = vmatprep.mubr.f32.mxu0 0.0
    %927 = vmatmul.mubr.f32.gmra.mxu0 %v229
    %v928 = vpop.f32.mrf.mxu0
    %v929 = vadd.f32 %v745, %v928
    %v930 = vpop.f32.mrf.mxu0
    %931 = vmatprep.mubr.f32.mxu0 0.0
    %932 = vmatmul.mubr.f32.gmra.mxu0 %v232
    %v933 = vpop.f32.mrf.mxu0
    %v934 = vadd.f32 %v745, %v933
    %v935 = vpop.f32.mrf.mxu0
    %936 = vmatprep.mubr.f32.mxu0 0.0
    %937 = vmatmul.mubr.f32.gmra.mxu0 %v235
    %v938 = vpop.f32.mrf.mxu0
    %v939 = vadd.f32 %v745, %v938
    %v940 = vpop.f32.mrf.mxu0
    %941 = vmatprep.mubr.f32.mxu0 0.0
    %942 = vmatmul.mubr.f32.gmra.mxu0 %v238
    %v943 = vpop.f32.mrf.mxu0
    %v944 = vadd.f32 %v745, %v943
    %v945 = vpop.f32.mrf.mxu0
    %946 = vmatprep.mubr.f32.mxu0 0.0
    %947 = vmatmul.mubr.f32.gmra.mxu0 %v241
    %v948 = vpop.f32.mrf.mxu0
    %v949 = vadd.f32 %v745, %v948
    %v950 = vpop.f32.mrf.mxu0
    %951 = vmatprep.mubr.f32.mxu0 0.0
    %952 = vmatmul.mubr.f32.gmra.mxu0 %v244
    %v953 = vpop.f32.mrf.mxu0
    %v954 = vadd.f32 %v745, %v953
    %v955 = vpop.f32.mrf.mxu0
    %956 = vmatprep.mubr.f32.mxu0 0.0
    %957 = vmatmul.mubr.f32.gmra.mxu0 %v247
    %v958 = vpop.f32.mrf.mxu0
    %v959 = vadd.f32 %v745, %v958
    %v960 = vpop.f32.mrf.mxu0
    %961 = vmatprep.mubr.f32.mxu0 0.0
    %962 = vmatmul.mubr.f32.gmra.mxu0 %v250
    %v963 = vpop.f32.mrf.mxu0
    %v964 = vadd.f32 %v745, %v963
    %v965 = vpop.f32.mrf.mxu0
    %966 = vmatprep.mubr.f32.mxu0 0.0
    %967 = vmatmul.mubr.f32.gmra.mxu0 %v253
    %v968 = vpop.f32.mrf.mxu0
    %v969 = vadd.f32 %v745, %v968
    %v970 = vpop.f32.mrf.mxu0
    %971 = vmatprep.mubr.f32.mxu0 0.0
    %972 = vmatmul.mubr.f32.gmra.mxu0 %v256
    %v973 = vpop.f32.mrf.mxu0
    %v974 = vadd.f32 %v745, %v973
    %v975 = vpop.f32.mrf.mxu0
    %976 = vmatprep.mubr.f32.mxu0 0.0
    %977 = vmatmul.mubr.f32.gmra.mxu0 %v259
    %v978 = vpop.f32.mrf.mxu0
    %v979 = vadd.f32 %v745, %v978
    %v980 = vpop.f32.mrf.mxu0
    %981 = vmatprep.mubr.f32.mxu0 0.0
    %982 = vmatmul.mubr.f32.gmra.mxu0 %v262
    %v983 = vpop.f32.mrf.mxu0
    %v984 = vadd.f32 %v745, %v983
    %v985 = vpop.f32.mrf.mxu0
    %986 = vmatprep.mubr.f32.mxu0 0.0
    %987 = vmatmul.mubr.f32.gmra.mxu0 %v265
    %v988 = vpop.f32.mrf.mxu0
    %v989 = vadd.f32 %v745, %v988
    %v990 = vpop.f32.mrf.mxu0
    %991 = vmatprep.mubr.f32.mxu0 0.0
    %992 = vmatmul.mubr.f32.gmra.mxu0 %v268
    %v993 = vpop.f32.mrf.mxu0
    %v994 = vadd.f32 %v745, %v993
    %v995 = vpop.f32.mrf.mxu0
    %996 = vmatprep.mubr.f32.mxu0 0.0
    %997 = vmatmul.mubr.f32.gmra.mxu0 %v271
    %v998 = vpop.f32.mrf.mxu0
    %v999 = vadd.f32 %v745, %v998
    %v1000 = vpop.f32.mrf.mxu0
    %1001 = vmatprep.mubr.f32.mxu0 0.0
    %1002 = vmatmul.mubr.f32.gmra.mxu0 %v274
    %v1003 = vpop.f32.mrf.mxu0
    %v1004 = vadd.f32 %v745, %v1003
    %v1005 = vpop.f32.mrf.mxu0
    %1006 = vmatprep.mubr.f32.mxu0 0.0
    %1007 = vmatmul.mubr.f32.gmra.mxu0 %v277
    %v1008 = vpop.f32.mrf.mxu0
    %v1009 = vadd.f32 %v745, %v1008
    %v1010 = vpop.f32.mrf.mxu0
    %1011 = vmatprep.mubr.f32.mxu0 0.0
    %1012 = vmatmul.mubr.f32.gmra.mxu0 %v280
    %v1013 = vpop.f32.mrf.mxu0
    %v1014 = vadd.f32 %v745, %v1013
    %v1015 = vpop.f32.mrf.mxu0
    %1016 = vmatprep.mubr.f32.mxu0 0.0
    %1017 = vmatmul.mubr.f32.gmra.mxu0 %v283
    %v1018 = vpop.f32.mrf.mxu0
    %v1019 = vadd.f32 %v745, %v1018
    %v1020 = vpop.f32.mrf.mxu0
    %1021 = vmatprep.mubr.f32.mxu0 0.0
    %1022 = vmatmul.mubr.f32.gmra.mxu0 %v286
    %v1023 = vpop.f32.mrf.mxu0
    %v1024 = vadd.f32 %v745, %v1023
    %v1025 = vpop.f32.mrf.mxu0
    %1026 = vmatprep.mubr.f32.mxu0 0.0
    %1027 = vmatmul.mubr.f32.gmra.mxu0 %v289
    %v1028 = vpop.f32.mrf.mxu0
    %v1029 = vadd.f32 %v745, %v1028
    %v1030 = vpop.f32.mrf.mxu0
    %1031 = vmatprep.mubr.f32.mxu0 0.0
    %1032 = vmatmul.mubr.f32.gmra.mxu0 %v292
    %v1033 = vpop.f32.mrf.mxu0
    %v1034 = vadd.f32 %v745, %v1033
    %v1035 = vpop.f32.mrf.mxu0
    %1036 = vmatprep.mubr.f32.mxu0 0.0
    %1037 = vmatmul.mubr.f32.gmra.mxu0 %v295
    %v1038 = vpop.f32.mrf.mxu0
    %v1039 = vadd.f32 %v745, %v1038
    %v1040 = vpop.f32.mrf.mxu0
    %1041 = vmatprep.mubr.f32.mxu0 0.0
    %1042 = vmatmul.mubr.f32.gmra.mxu0 %v298
    %v1043 = vpop.f32.mrf.mxu0
    %v1044 = vadd.f32 %v745, %v1043
    %v1045 = vpop.f32.mrf.mxu0
    %1046 = vmatprep.mubr.f32.mxu0 0.0
    %1047 = vmatmul.mubr.f32.gmra.mxu0 %v301
    %v1048 = vpop.f32.mrf.mxu0
    %v1049 = vadd.f32 %v745, %v1048
    %v1050 = vpop.f32.mrf.mxu0
    %1051 = vmatprep.mubr.f32.mxu0 0.0
    %1052 = vmatmul.mubr.f32.gmra.mxu0 %v304
    %v1053 = vpop.f32.mrf.mxu0
    %v1054 = vadd.f32 %v745, %v1053
    %v1055 = vpop.f32.mrf.mxu0
    %1056 = vmatprep.mubr.f32.mxu0 0.0
    %1057 = vmatmul.mubr.f32.gmra.mxu0 %v307
    %v1058 = vpop.f32.mrf.mxu0
    %v1059 = vadd.f32 %v745, %v1058
    %v1060 = vpop.f32.mrf.mxu0
    %1061 = vmatprep.mubr.f32.mxu0 0.0
    %1062 = vmatmul.mubr.f32.gmra.mxu0 %v310
    %v1063 = vpop.f32.mrf.mxu0
    %v1064 = vadd.f32 %v745, %v1063
    %v1065 = vpop.f32.mrf.mxu0
    %1066 = vmatprep.mubr.f32.mxu0 0.0
    %1067 = vmatmul.mubr.f32.gmra.mxu0 %v313
    %v1068 = vpop.f32.mrf.mxu0
    %v1069 = vadd.f32 %v745, %v1068
    %v1070 = vpop.f32.mrf.mxu0
    %1071 = vmatprep.mubr.f32.mxu0 0.0
    %1072 = vmatmul.mubr.f32.gmra.mxu0 %v316
    %v1073 = vpop.f32.mrf.mxu0
    %v1074 = vadd.f32 %v745, %v1073
    %v1075 = vpop.f32.mrf.mxu0
    %1076 = vmatprep.mubr.f32.mxu0 0.0
    %1077 = vmatmul.mubr.f32.gmra.mxu0 %v319
    %v1078 = vpop.f32.mrf.mxu0
    %v1079 = vadd.f32 %v745, %v1078
    %v1080 = vpop.f32.mrf.mxu0
    %1081 = vmatprep.mubr.f32.mxu0 0.0
    %1082 = vmatmul.mubr.f32.gmra.mxu0 %v322
    %v1083 = vpop.f32.mrf.mxu0
    %v1084 = vadd.f32 %v745, %v1083
    %v1085 = vpop.f32.mrf.mxu0
    %1086 = vmatprep.mubr.f32.mxu0 0.0
    %1087 = vmatmul.mubr.f32.gmra.mxu0 %v325
    %v1088 = vpop.f32.mrf.mxu0
    %v1089 = vadd.f32 %v745, %v1088
    %v1090 = vpop.f32.mrf.mxu0
    %1091 = vmatprep.mubr.f32.mxu0 0.0
    %1092 = vmatmul.mubr.f32.gmra.mxu0 %v328
    %v1093 = vpop.f32.mrf.mxu0
    %v1094 = vadd.f32 %v745, %v1093
    %v1095 = vpop.f32.mrf.mxu0
    %1096 = vmatprep.mubr.f32.mxu0 0.0
    %1097 = vmatmul.mubr.f32.gmra.mxu0 %v331
    %v1098 = vpop.f32.mrf.mxu0
    %v1099 = vadd.f32 %v745, %v1098
    %v1100 = vpop.f32.mrf.mxu0
    %1101 = vmatprep.mubr.f32.mxu0 0.0
    %1102 = vmatmul.mubr.f32.gmra.mxu0 %v334
    %v1103 = vpop.f32.mrf.mxu0
    %v1104 = vadd.f32 %v745, %v1103
    %v1105 = vpop.f32.mrf.mxu0
    %1106 = vmatprep.mubr.f32.mxu0 0.0
    %1107 = vmatmul.mubr.f32.gmra.mxu0 %v337
    %v1108 = vpop.f32.mrf.mxu0
    %v1109 = vadd.f32 %v745, %v1108
    %v1110 = vpop.f32.mrf.mxu0
    %1111 = vmatprep.mubr.f32.mxu0 0.0
    %1112 = vmatmul.mubr.f32.gmra.mxu0 %v340
    %v1113 = vpop.f32.mrf.mxu0
    %v1114 = vadd.f32 %v745, %v1113
    %v1115 = vpop.f32.mrf.mxu0
    %1116 = vmatprep.mubr.f32.mxu0 0.0
    %1117 = vmatmul.mubr.f32.gmra.mxu0 %v343
    %v1118 = vpop.f32.mrf.mxu0
    %v1119 = vadd.f32 %v745, %v1118
    %v1120 = vpop.f32.mrf.mxu0
    %1121 = vmatprep.mubr.f32.mxu0 0.0
    %1122 = vmatmul.mubr.f32.gmra.mxu0 %v346
    %v1123 = vpop.f32.mrf.mxu0
    %v1124 = vadd.f32 %v745, %v1123
    %v1125 = vpop.f32.mrf.mxu0
    %1126 = vmatprep.mubr.f32.mxu0 0.0
    %1127 = vmatmul.mubr.f32.gmra.mxu0 %v349
    %v1128 = vpop.f32.mrf.mxu0
    %v1129 = vadd.f32 %v745, %v1128
    %v1130 = vpop.f32.mrf.mxu0
    %1131 = vdwg.mxu0
    %v1132 = vld [vmem:[#allocation7] sm:$0xff]
    %v1133 = vld [vmem:[#allocation7 + $0x8] sm:$0xff]
    %v1134 = vld [vmem:[#allocation7 + $0x10] sm:$0xff]
    %v1135 = vld [vmem:[#allocation7 + $0x18] sm:$0xff]
    %v1136 = vld [vmem:[%s7] sm:$0x1]
    %v1138 = vlaneseq
    %v1139 = vshrl.u32 %v1138, 7
    %v1140 = vsub.s32 0, %v1139
    %v1141 = vrot.slane %v1136, %v1140
    %1143 = vmatprep.subr.mxu0 0.0
    %1144 = vmatpush1.msra.mxu0 0.0
    %1145 = vmatprep.subr.mxu0 0.0
    %1146 = vmatpush1.msra.mxu0 0.0
    %1147 = vmatprep.subr.mxu0 0.0
    %1148 = vmatpush1.msra.mxu0 0.0
    %1149 = vmatprep.subr.mxu0 0.0
    %1150 = vmatpush1.msra.mxu0 0.0
    %1151 = vmatprep.subr.mxu0 0.0
    %1152 = vmatpush1.msra.mxu0 0.0
    %1153 = vmatprep.subr.mxu0 0.0
    %1154 = vmatpush1.msra.mxu0 0.0
    %1155 = vmatprep.subr.mxu0 0.0
    %1156 = vmatpush1.msra.mxu0 0.0
    %1157 = vmatprep.subr.mxu0 0.0
    %1158 = vmatpush1.msra.mxu0 0.0
    %1159 = vmatprep.subr.mxu0 0.0
    %1160 = vmatpush1.msra.mxu0 0.0
    %1161 = vmatprep.subr.mxu0 0.0
    %1162 = vmatpush1.msra.mxu0 0.0
    %1163 = vmatprep.subr.mxu0 0.0
    %1164 = vmatpush1.msra.mxu0 0.0
    %1165 = vmatprep.subr.mxu0 0.0
    %1166 = vmatpush1.msra.mxu0 0.0
    %1167 = vmatprep.subr.mxu0 0.0
    %1168 = vmatpush1.msra.mxu0 %v1135
    %1169 = vmatprep.subr.mxu0 0.0
    %1170 = vmatpush1.msra.mxu0 %v1134
    %1171 = vmatprep.subr.mxu0 0.0
    %1172 = vmatpush1.msra.mxu0 %v1133
    %1173 = vmatprep.subr.mxu0 0.0
    %1174 = vmatpush1.msra.mxu0 %v1132
    %1175 = vmatprep.subr.mxu0 0.0
    %1176 = vmatpush2.msra.mxu0 0.0
    %1177 = vmatprep.subr.mxu0 0.0
    %1178 = vmatpush2.msra.mxu0 0.0
    %1179 = vmatprep.subr.mxu0 0.0
    %1180 = vmatpush2.msra.mxu0 0.0
    %1181 = vmatprep.subr.mxu0 0.0
    %1182 = vmatpush2.msra.mxu0 0.0
    %1183 = vmatprep.subr.mxu0 0.0
    %1184 = vmatpush2.msra.mxu0 0.0
    %1185 = vmatprep.subr.mxu0 0.0
    %1186 = vmatpush2.msra.mxu0 0.0
    %1187 = vmatprep.subr.mxu0 0.0
    %1188 = vmatpush2.msra.mxu0 0.0
    %1189 = vmatprep.subr.mxu0 0.0
    %1190 = vmatpush2.msra.mxu0 0.0
    %1191 = vmatprep.subr.mxu0 0.0
    %1192 = vmatpush2.msra.mxu0 0.0
    %1193 = vmatprep.subr.mxu0 0.0
    %1194 = vmatpush2.msra.mxu0 0.0
    %1195 = vmatprep.subr.mxu0 0.0
    %1196 = vmatpush2.msra.mxu0 0.0
    %1197 = vmatprep.subr.mxu0 0.0
    %1198 = vmatpush2.msra.mxu0 0.0
    %1199 = vmatprep.subr.mxu0 0.0
    %1200 = vmatpush2.msra.mxu0 0.0
    %1201 = vmatprep.subr.mxu0 0.0
    %1202 = vmatpush2.msra.mxu0 0.0
    %1203 = vmatprep.subr.mxu0 0.0
    %1204 = vmatpush2.msra.mxu0 0.0
    %1205 = vmatprep.subr.mxu0 0.0
    %1206 = vmatpush2.msra.mxu0 0.0
    %1207 = vmatprep.mubr.f32.mxu0 0.0
    %1208 = vmatmul.mubr.f32.gmra.mxu0 %v160
    %v1209 = vpop.f32.mrf.mxu0
    %v1210 = vadd.f32 %v1141, %v1209
    %v1211 = vpop.f32.mrf.mxu0
    %1212 = vmatprep.mubr.f32.mxu0 0.0
    %1213 = vmatmul.mubr.f32.gmra.mxu0 %v163
    %v1214 = vpop.f32.mrf.mxu0
    %v1215 = vadd.f32 %v1141, %v1214
    %v1216 = vpop.f32.mrf.mxu0
    %1217 = vmatprep.mubr.f32.mxu0 0.0
    %1218 = vmatmul.mubr.f32.gmra.mxu0 %v166
    %v1219 = vpop.f32.mrf.mxu0
    %v1220 = vadd.f32 %v1141, %v1219
    %v1221 = vpop.f32.mrf.mxu0
    %1222 = vmatprep.mubr.f32.mxu0 0.0
    %1223 = vmatmul.mubr.f32.gmra.mxu0 %v169
    %v1224 = vpop.f32.mrf.mxu0
    %v1225 = vadd.f32 %v1141, %v1224
    %v1226 = vpop.f32.mrf.mxu0
    %1227 = vmatprep.mubr.f32.mxu0 0.0
    %1228 = vmatmul.mubr.f32.gmra.mxu0 %v172
    %v1229 = vpop.f32.mrf.mxu0
    %v1230 = vadd.f32 %v1141, %v1229
    %v1231 = vpop.f32.mrf.mxu0
    %1232 = vmatprep.mubr.f32.mxu0 0.0
    %1233 = vmatmul.mubr.f32.gmra.mxu0 %v175
    %v1234 = vpop.f32.mrf.mxu0
    %v1235 = vadd.f32 %v1141, %v1234
    %v1236 = vpop.f32.mrf.mxu0
    %1237 = vmatprep.mubr.f32.mxu0 0.0
    %1238 = vmatmul.mubr.f32.gmra.mxu0 %v178
    %v1239 = vpop.f32.mrf.mxu0
    %v1240 = vadd.f32 %v1141, %v1239
    %v1241 = vpop.f32.mrf.mxu0
    %1242 = vmatprep.mubr.f32.mxu0 0.0
    %1243 = vmatmul.mubr.f32.gmra.mxu0 %v181
    %v1244 = vpop.f32.mrf.mxu0
    %v1245 = vadd.f32 %v1141, %v1244
    %v1246 = vpop.f32.mrf.mxu0
    %1247 = vmatprep.mubr.f32.mxu0 0.0
    %1248 = vmatmul.mubr.f32.gmra.mxu0 %v184
    %v1249 = vpop.f32.mrf.mxu0
    %v1250 = vadd.f32 %v1141, %v1249
    %v1251 = vpop.f32.mrf.mxu0
    %1252 = vmatprep.mubr.f32.mxu0 0.0
    %1253 = vmatmul.mubr.f32.gmra.mxu0 %v187
    %v1254 = vpop.f32.mrf.mxu0
    %v1255 = vadd.f32 %v1141, %v1254
    %v1256 = vpop.f32.mrf.mxu0
    %1257 = vmatprep.mubr.f32.mxu0 0.0
    %1258 = vmatmul.mubr.f32.gmra.mxu0 %v190
    %v1259 = vpop.f32.mrf.mxu0
    %v1260 = vadd.f32 %v1141, %v1259
    %v1261 = vpop.f32.mrf.mxu0
    %1262 = vmatprep.mubr.f32.mxu0 0.0
    %1263 = vmatmul.mubr.f32.gmra.mxu0 %v193
    %v1264 = vpop.f32.mrf.mxu0
    %v1265 = vadd.f32 %v1141, %v1264
    %v1266 = vpop.f32.mrf.mxu0
    %1267 = vmatprep.mubr.f32.mxu0 0.0
    %1268 = vmatmul.mubr.f32.gmra.mxu0 %v196
    %v1269 = vpop.f32.mrf.mxu0
    %v1270 = vadd.f32 %v1141, %v1269
    %v1271 = vpop.f32.mrf.mxu0
    %1272 = vmatprep.mubr.f32.mxu0 0.0
    %1273 = vmatmul.mubr.f32.gmra.mxu0 %v199
    %v1274 = vpop.f32.mrf.mxu0
    %v1275 = vadd.f32 %v1141, %v1274
    %v1276 = vpop.f32.mrf.mxu0
    %1277 = vmatprep.mubr.f32.mxu0 0.0
    %1278 = vmatmul.mubr.f32.gmra.mxu0 %v202
    %v1279 = vpop.f32.mrf.mxu0
    %v1280 = vadd.f32 %v1141, %v1279
    %v1281 = vpop.f32.mrf.mxu0
    %1282 = vmatprep.mubr.f32.mxu0 0.0
    %1283 = vmatmul.mubr.f32.gmra.mxu0 %v205
    %v1284 = vpop.f32.mrf.mxu0
    %v1285 = vadd.f32 %v1141, %v1284
    %v1286 = vpop.f32.mrf.mxu0
    %1287 = vmatprep.mubr.f32.mxu0 0.0
    %1288 = vmatmul.mubr.f32.gmra.mxu0 %v208
    %v1289 = vpop.f32.mrf.mxu0
    %v1290 = vadd.f32 %v1141, %v1289
    %v1291 = vpop.f32.mrf.mxu0
    %1292 = vmatprep.mubr.f32.mxu0 0.0
    %1293 = vmatmul.mubr.f32.gmra.mxu0 %v211
    %v1294 = vpop.f32.mrf.mxu0
    %v1295 = vadd.f32 %v1141, %v1294
    %v1296 = vpop.f32.mrf.mxu0
    %1297 = vmatprep.mubr.f32.mxu0 0.0
    %1298 = vmatmul.mubr.f32.gmra.mxu0 %v214
    %v1299 = vpop.f32.mrf.mxu0
    %v1300 = vadd.f32 %v1141, %v1299
    %v1301 = vpop.f32.mrf.mxu0
    %1302 = vmatprep.mubr.f32.mxu0 0.0
    %1303 = vmatmul.mubr.f32.gmra.mxu0 %v217
    %v1304 = vpop.f32.mrf.mxu0
    %v1305 = vadd.f32 %v1141, %v1304
    %v1306 = vpop.f32.mrf.mxu0
    %1307 = vmatprep.mubr.f32.mxu0 0.0
    %1308 = vmatmul.mubr.f32.gmra.mxu0 %v220
    %v1309 = vpop.f32.mrf.mxu0
    %v1310 = vadd.f32 %v1141, %v1309
    %v1311 = vpop.f32.mrf.mxu0
    %1312 = vmatprep.mubr.f32.mxu0 0.0
    %1313 = vmatmul.mubr.f32.gmra.mxu0 %v223
    %v1314 = vpop.f32.mrf.mxu0
    %v1315 = vadd.f32 %v1141, %v1314
    %v1316 = vpop.f32.mrf.mxu0
    %1317 = vmatprep.mubr.f32.mxu0 0.0
    %1318 = vmatmul.mubr.f32.gmra.mxu0 %v226
    %v1319 = vpop.f32.mrf.mxu0
    %v1320 = vadd.f32 %v1141, %v1319
    %v1321 = vpop.f32.mrf.mxu0
    %1322 = vmatprep.mubr.f32.mxu0 0.0
    %1323 = vmatmul.mubr.f32.gmra.mxu0 %v229
    %v1324 = vpop.f32.mrf.mxu0
    %v1325 = vadd.f32 %v1141, %v1324
    %v1326 = vpop.f32.mrf.mxu0
    %1327 = vmatprep.mubr.f32.mxu0 0.0
    %1328 = vmatmul.mubr.f32.gmra.mxu0 %v232
    %v1329 = vpop.f32.mrf.mxu0
    %v1330 = vadd.f32 %v1141, %v1329
    %v1331 = vpop.f32.mrf.mxu0
    %1332 = vmatprep.mubr.f32.mxu0 0.0
    %1333 = vmatmul.mubr.f32.gmra.mxu0 %v235
    %v1334 = vpop.f32.mrf.mxu0
    %v1335 = vadd.f32 %v1141, %v1334
    %v1336 = vpop.f32.mrf.mxu0
    %1337 = vmatprep.mubr.f32.mxu0 0.0
    %1338 = vmatmul.mubr.f32.gmra.mxu0 %v238
    %v1339 = vpop.f32.mrf.mxu0
    %v1340 = vadd.f32 %v1141, %v1339
    %v1341 = vpop.f32.mrf.mxu0
    %1342 = vmatprep.mubr.f32.mxu0 0.0
    %1343 = vmatmul.mubr.f32.gmra.mxu0 %v241
    %v1344 = vpop.f32.mrf.mxu0
    %v1345 = vadd.f32 %v1141, %v1344
    %v1346 = vpop.f32.mrf.mxu0
    %1347 = vmatprep.mubr.f32.mxu0 0.0
    %1348 = vmatmul.mubr.f32.gmra.mxu0 %v244
    %v1349 = vpop.f32.mrf.mxu0
    %v1350 = vadd.f32 %v1141, %v1349
    %v1351 = vpop.f32.mrf.mxu0
    %1352 = vmatprep.mubr.f32.mxu0 0.0
    %1353 = vmatmul.mubr.f32.gmra.mxu0 %v247
    %v1354 = vpop.f32.mrf.mxu0
    %v1355 = vadd.f32 %v1141, %v1354
    %v1356 = vpop.f32.mrf.mxu0
    %1357 = vmatprep.mubr.f32.mxu0 0.0
    %1358 = vmatmul.mubr.f32.gmra.mxu0 %v250
    %v1359 = vpop.f32.mrf.mxu0
    %v1360 = vadd.f32 %v1141, %v1359
    %v1361 = vpop.f32.mrf.mxu0
    %1362 = vmatprep.mubr.f32.mxu0 0.0
    %1363 = vmatmul.mubr.f32.gmra.mxu0 %v253
    %v1364 = vpop.f32.mrf.mxu0
    %v1365 = vadd.f32 %v1141, %v1364
    %v1366 = vpop.f32.mrf.mxu0
    %1367 = vmatprep.mubr.f32.mxu0 0.0
    %1368 = vmatmul.mubr.f32.gmra.mxu0 %v256
    %v1369 = vpop.f32.mrf.mxu0
    %v1370 = vadd.f32 %v1141, %v1369
    %v1371 = vpop.f32.mrf.mxu0
    %1372 = vmatprep.mubr.f32.mxu0 0.0
    %1373 = vmatmul.mubr.f32.gmra.mxu0 %v259
    %v1374 = vpop.f32.mrf.mxu0
    %v1375 = vadd.f32 %v1141, %v1374
    %v1376 = vpop.f32.mrf.mxu0
    %1377 = vmatprep.mubr.f32.mxu0 0.0
    %1378 = vmatmul.mubr.f32.gmra.mxu0 %v262
    %v1379 = vpop.f32.mrf.mxu0
    %v1380 = vadd.f32 %v1141, %v1379
    %v1381 = vpop.f32.mrf.mxu0
    %1382 = vmatprep.mubr.f32.mxu0 0.0
    %1383 = vmatmul.mubr.f32.gmra.mxu0 %v265
    %v1384 = vpop.f32.mrf.mxu0
    %v1385 = vadd.f32 %v1141, %v1384
    %v1386 = vpop.f32.mrf.mxu0
    %1387 = vmatprep.mubr.f32.mxu0 0.0
    %1388 = vmatmul.mubr.f32.gmra.mxu0 %v268
    %v1389 = vpop.f32.mrf.mxu0
    %v1390 = vadd.f32 %v1141, %v1389
    %v1391 = vpop.f32.mrf.mxu0
    %1392 = vmatprep.mubr.f32.mxu0 0.0
    %1393 = vmatmul.mubr.f32.gmra.mxu0 %v271
    %v1394 = vpop.f32.mrf.mxu0
    %v1395 = vadd.f32 %v1141, %v1394
    %v1396 = vpop.f32.mrf.mxu0
    %1397 = vmatprep.mubr.f32.mxu0 0.0
    %1398 = vmatmul.mubr.f32.gmra.mxu0 %v274
    %v1399 = vpop.f32.mrf.mxu0
    %v1400 = vadd.f32 %v1141, %v1399
    %v1401 = vpop.f32.mrf.mxu0
    %1402 = vmatprep.mubr.f32.mxu0 0.0
    %1403 = vmatmul.mubr.f32.gmra.mxu0 %v277
    %v1404 = vpop.f32.mrf.mxu0
    %v1405 = vadd.f32 %v1141, %v1404
    %v1406 = vpop.f32.mrf.mxu0
    %1407 = vmatprep.mubr.f32.mxu0 0.0
    %1408 = vmatmul.mubr.f32.gmra.mxu0 %v280
    %v1409 = vpop.f32.mrf.mxu0
    %v1410 = vadd.f32 %v1141, %v1409
    %v1411 = vpop.f32.mrf.mxu0
    %1412 = vmatprep.mubr.f32.mxu0 0.0
    %1413 = vmatmul.mubr.f32.gmra.mxu0 %v283
    %v1414 = vpop.f32.mrf.mxu0
    %v1415 = vadd.f32 %v1141, %v1414
    %v1416 = vpop.f32.mrf.mxu0
    %1417 = vmatprep.mubr.f32.mxu0 0.0
    %1418 = vmatmul.mubr.f32.gmra.mxu0 %v286
    %v1419 = vpop.f32.mrf.mxu0
    %v1420 = vadd.f32 %v1141, %v1419
    %v1421 = vpop.f32.mrf.mxu0
    %1422 = vmatprep.mubr.f32.mxu0 0.0
    %1423 = vmatmul.mubr.f32.gmra.mxu0 %v289
    %v1424 = vpop.f32.mrf.mxu0
    %v1425 = vadd.f32 %v1141, %v1424
    %v1426 = vpop.f32.mrf.mxu0
    %1427 = vmatprep.mubr.f32.mxu0 0.0
    %1428 = vmatmul.mubr.f32.gmra.mxu0 %v292
    %v1429 = vpop.f32.mrf.mxu0
    %v1430 = vadd.f32 %v1141, %v1429
    %v1431 = vpop.f32.mrf.mxu0
    %1432 = vmatprep.mubr.f32.mxu0 0.0
    %1433 = vmatmul.mubr.f32.gmra.mxu0 %v295
    %v1434 = vpop.f32.mrf.mxu0
    %v1435 = vadd.f32 %v1141, %v1434
    %v1436 = vpop.f32.mrf.mxu0
    %1437 = vmatprep.mubr.f32.mxu0 0.0
    %1438 = vmatmul.mubr.f32.gmra.mxu0 %v298
    %v1439 = vpop.f32.mrf.mxu0
    %v1440 = vadd.f32 %v1141, %v1439
    %v1441 = vpop.f32.mrf.mxu0
    %1442 = vmatprep.mubr.f32.mxu0 0.0
    %1443 = vmatmul.mubr.f32.gmra.mxu0 %v301
    %v1444 = vpop.f32.mrf.mxu0
    %v1445 = vadd.f32 %v1141, %v1444
    %v1446 = vpop.f32.mrf.mxu0
    %1447 = vmatprep.mubr.f32.mxu0 0.0
    %1448 = vmatmul.mubr.f32.gmra.mxu0 %v304
    %v1449 = vpop.f32.mrf.mxu0
    %v1450 = vadd.f32 %v1141, %v1449
    %v1451 = vpop.f32.mrf.mxu0
    %1452 = vmatprep.mubr.f32.mxu0 0.0
    %1453 = vmatmul.mubr.f32.gmra.mxu0 %v307
    %v1454 = vpop.f32.mrf.mxu0
    %v1455 = vadd.f32 %v1141, %v1454
    %v1456 = vpop.f32.mrf.mxu0
    %1457 = vmatprep.mubr.f32.mxu0 0.0
    %1458 = vmatmul.mubr.f32.gmra.mxu0 %v310
    %v1459 = vpop.f32.mrf.mxu0
    %v1460 = vadd.f32 %v1141, %v1459
    %v1461 = vpop.f32.mrf.mxu0
    %1462 = vmatprep.mubr.f32.mxu0 0.0
    %1463 = vmatmul.mubr.f32.gmra.mxu0 %v313
    %v1464 = vpop.f32.mrf.mxu0
    %v1465 = vadd.f32 %v1141, %v1464
    %v1466 = vpop.f32.mrf.mxu0
    %1467 = vmatprep.mubr.f32.mxu0 0.0
    %1468 = vmatmul.mubr.f32.gmra.mxu0 %v316
    %v1469 = vpop.f32.mrf.mxu0
    %v1470 = vadd.f32 %v1141, %v1469
    %v1471 = vpop.f32.mrf.mxu0
    %1472 = vmatprep.mubr.f32.mxu0 0.0
    %1473 = vmatmul.mubr.f32.gmra.mxu0 %v319
    %v1474 = vpop.f32.mrf.mxu0
    %v1475 = vadd.f32 %v1141, %v1474
    %v1476 = vpop.f32.mrf.mxu0
    %1477 = vmatprep.mubr.f32.mxu0 0.0
    %1478 = vmatmul.mubr.f32.gmra.mxu0 %v322
    %v1479 = vpop.f32.mrf.mxu0
    %v1480 = vadd.f32 %v1141, %v1479
    %v1481 = vpop.f32.mrf.mxu0
    %1482 = vmatprep.mubr.f32.mxu0 0.0
    %1483 = vmatmul.mubr.f32.gmra.mxu0 %v325
    %v1484 = vpop.f32.mrf.mxu0
    %v1485 = vadd.f32 %v1141, %v1484
    %v1486 = vpop.f32.mrf.mxu0
    %1487 = vmatprep.mubr.f32.mxu0 0.0
    %1488 = vmatmul.mubr.f32.gmra.mxu0 %v328
    %v1489 = vpop.f32.mrf.mxu0
    %v1490 = vadd.f32 %v1141, %v1489
    %v1491 = vpop.f32.mrf.mxu0
    %1492 = vmatprep.mubr.f32.mxu0 0.0
    %1493 = vmatmul.mubr.f32.gmra.mxu0 %v331
    %v1494 = vpop.f32.mrf.mxu0
    %v1495 = vadd.f32 %v1141, %v1494
    %v1496 = vpop.f32.mrf.mxu0
    %1497 = vmatprep.mubr.f32.mxu0 0.0
    %1498 = vmatmul.mubr.f32.gmra.mxu0 %v334
    %v1499 = vpop.f32.mrf.mxu0
    %v1500 = vadd.f32 %v1141, %v1499
    %v1501 = vpop.f32.mrf.mxu0
    %1502 = vmatprep.mubr.f32.mxu0 0.0
    %1503 = vmatmul.mubr.f32.gmra.mxu0 %v337
    %v1504 = vpop.f32.mrf.mxu0
    %v1505 = vadd.f32 %v1141, %v1504
    %v1506 = vpop.f32.mrf.mxu0
    %1507 = vmatprep.mubr.f32.mxu0 0.0
    %1508 = vmatmul.mubr.f32.gmra.mxu0 %v340
    %v1509 = vpop.f32.mrf.mxu0
    %v1510 = vadd.f32 %v1141, %v1509
    %v1511 = vpop.f32.mrf.mxu0
    %1512 = vmatprep.mubr.f32.mxu0 0.0
    %1513 = vmatmul.mubr.f32.gmra.mxu0 %v343
    %v1514 = vpop.f32.mrf.mxu0
    %v1515 = vadd.f32 %v1141, %v1514
    %v1516 = vpop.f32.mrf.mxu0
    %1517 = vmatprep.mubr.f32.mxu0 0.0
    %1518 = vmatmul.mubr.f32.gmra.mxu0 %v346
    %v1519 = vpop.f32.mrf.mxu0
    %v1520 = vadd.f32 %v1141, %v1519
    %v1521 = vpop.f32.mrf.mxu0
    %1522 = vmatprep.mubr.f32.mxu0 0.0
    %1523 = vmatmul.mubr.f32.gmra.mxu0 %v349
    %v1524 = vpop.f32.mrf.mxu0
    %v1525 = vadd.f32 %v1141, %v1524
    %v1526 = vpop.f32.mrf.mxu0
    %1527 = vdwg.mxu0
    %v1528 = vld [vmem:[%s8] sm:$0xff]
    %v1529 = vld [vmem:[%s8 + $0x8] sm:$0xff]
    %v1530 = vld [vmem:[%s8 + $0x10] sm:$0xff]
    %v1531 = vld [vmem:[%s8 + $0x18] sm:$0xff]
    %v1532 = vld [vmem:[%s8 + $0x20] sm:$0xff]
    %v1533 = vld [vmem:[%s8 + $0x28] sm:$0xff]
    %v1534 = vld [vmem:[%s8 + $0x30] sm:$0xff]
    %v1535 = vld [vmem:[%s8 + $0x38] sm:$0xff]
    %v1536 = vld [vmem:[%s8 + $0x40] sm:$0xff]
    %v1537 = vld [vmem:[%s8 + $0x48] sm:$0xff]
    %v1538 = vld [vmem:[%s8 + $0x50] sm:$0xff]
    %v1539 = vld [vmem:[%s8 + $0x58] sm:$0xff]
    %v1540 = vld [vmem:[%s8 + $0x60] sm:$0xff]
    %v1541 = vld [vmem:[%s8 + $0x68] sm:$0xff]
    %v1542 = vld [vmem:[%s8 + $0x70] sm:$0xff]
    %v1543 = vld [vmem:[%s8 + $0x78] sm:$0xff]
    %v1544 = vld [vmem:[%s9] sm:$0x1]
    %v1546 = vlaneseq
    %v1547 = vshrl.u32 %v1546, 7
    %v1548 = vsub.s32 0, %v1547
    %v1549 = vrot.slane %v1544, %v1548
    %1551 = vmatprep.subr.mxu0 0.0
    %1552 = vmatpush1.msra.mxu0 %v1543
    %1553 = vmatprep.subr.mxu0 0.0
    %1554 = vmatpush1.msra.mxu0 %v1542
    %1555 = vmatprep.subr.mxu0 0.0
    %1556 = vmatpush1.msra.mxu0 %v1541
    %1557 = vmatprep.subr.mxu0 0.0
    %1558 = vmatpush1.msra.mxu0 %v1540
    %1559 = vmatprep.subr.mxu0 0.0
    %1560 = vmatpush1.msra.mxu0 %v1539
    %1561 = vmatprep.subr.mxu0 0.0
    %1562 = vmatpush1.msra.mxu0 %v1538
    %1563 = vmatprep.subr.mxu0 0.0
    %1564 = vmatpush1.msra.mxu0 %v1537
    %1565 = vmatprep.subr.mxu0 0.0
    %1566 = vmatpush1.msra.mxu0 %v1536
    %1567 = vmatprep.subr.mxu0 0.0
    %1568 = vmatpush1.msra.mxu0 %v1535
    %1569 = vmatprep.subr.mxu0 0.0
    %1570 = vmatpush1.msra.mxu0 %v1534
    %1571 = vmatprep.subr.mxu0 0.0
    %1572 = vmatpush1.msra.mxu0 %v1533
    %1573 = vmatprep.subr.mxu0 0.0
    %1574 = vmatpush1.msra.mxu0 %v1532
    %1575 = vmatprep.subr.mxu0 0.0
    %1576 = vmatpush1.msra.mxu0 %v1531
    %1577 = vmatprep.subr.mxu0 0.0
    %1578 = vmatpush1.msra.mxu0 %v1530
    %1579 = vmatprep.subr.mxu0 0.0
    %1580 = vmatpush1.msra.mxu0 %v1529
    %1581 = vmatprep.subr.mxu0 0.0
    %1582 = vmatpush1.msra.mxu0 %v1528
    %1583 = vmatprep.subr.mxu0 0.0
    %1584 = vmatpush2.msra.mxu0 0.0
    %1585 = vmatprep.subr.mxu0 0.0
    %1586 = vmatpush2.msra.mxu0 0.0
    %1587 = vmatprep.subr.mxu0 0.0
    %1588 = vmatpush2.msra.mxu0 0.0
    %1589 = vmatprep.subr.mxu0 0.0
    %1590 = vmatpush2.msra.mxu0 0.0
    %1591 = vmatprep.subr.mxu0 0.0
    %1592 = vmatpush2.msra.mxu0 0.0
    %1593 = vmatprep.subr.mxu0 0.0
    %1594 = vmatpush2.msra.mxu0 0.0
    %1595 = vmatprep.subr.mxu0 0.0
    %1596 = vmatpush2.msra.mxu0 0.0
    %1597 = vmatprep.subr.mxu0 0.0
    %1598 = vmatpush2.msra.mxu0 0.0
    %1599 = vmatprep.subr.mxu0 0.0
    %1600 = vmatpush2.msra.mxu0 0.0
    %1601 = vmatprep.subr.mxu0 0.0
    %1602 = vmatpush2.msra.mxu0 0.0
    %1603 = vmatprep.subr.mxu0 0.0
    %1604 = vmatpush2.msra.mxu0 0.0
    %1605 = vmatprep.subr.mxu0 0.0
    %1606 = vmatpush2.msra.mxu0 0.0
    %1607 = vmatprep.subr.mxu0 0.0
    %1608 = vmatpush2.msra.mxu0 0.0
    %1609 = vmatprep.subr.mxu0 0.0
    %1610 = vmatpush2.msra.mxu0 0.0
    %1611 = vmatprep.subr.mxu0 0.0
    %1612 = vmatpush2.msra.mxu0 0.0
    %1613 = vmatprep.subr.mxu0 0.0
    %1614 = vmatpush2.msra.mxu0 0.0
    %1615 = vmatprep.mubr.f32.mxu0 0.0
    %1616 = vmatmul.mubr.f32.gmra.mxu0 %v418
    %v1617 = vpop.f32.mrf.mxu0
    %v1618 = vadd.f32 %v1549, %v1617
    %v1619 = vpop.f32.mrf.mxu0
    %1620 = vmatprep.mubr.f32.mxu0 0.0
    %1621 = vmatmul.mubr.f32.gmra.mxu0 %v423
    %v1622 = vpop.f32.mrf.mxu0
    %v1623 = vadd.f32 %v1549, %v1622
    %v1624 = vpop.f32.mrf.mxu0
    %1625 = vmatprep.mubr.f32.mxu0 0.0
    %1626 = vmatmul.mubr.f32.gmra.mxu0 %v428
    %v1627 = vpop.f32.mrf.mxu0
    %v1628 = vadd.f32 %v1549, %v1627
    %v1629 = vpop.f32.mrf.mxu0
    %1630 = vmatprep.mubr.f32.mxu0 0.0
    %1631 = vmatmul.mubr.f32.gmra.mxu0 %v433
    %v1632 = vpop.f32.mrf.mxu0
    %v1633 = vadd.f32 %v1549, %v1632
    %v1634 = vpop.f32.mrf.mxu0
    %1635 = vmatprep.mubr.f32.mxu0 0.0
    %1636 = vmatmul.mubr.f32.gmra.mxu0 %v438
    %v1637 = vpop.f32.mrf.mxu0
    %v1638 = vadd.f32 %v1549, %v1637
    %v1639 = vpop.f32.mrf.mxu0
    %1640 = vmatprep.mubr.f32.mxu0 0.0
    %1641 = vmatmul.mubr.f32.gmra.mxu0 %v443
    %v1642 = vpop.f32.mrf.mxu0
    %v1643 = vadd.f32 %v1549, %v1642
    %v1644 = vpop.f32.mrf.mxu0
    %1645 = vmatprep.mubr.f32.mxu0 0.0
    %1646 = vmatmul.mubr.f32.gmra.mxu0 %v448
    %v1647 = vpop.f32.mrf.mxu0
    %v1648 = vadd.f32 %v1549, %v1647
    %v1649 = vpop.f32.mrf.mxu0
    %1650 = vmatprep.mubr.f32.mxu0 0.0
    %1651 = vmatmul.mubr.f32.gmra.mxu0 %v453
    %v1652 = vpop.f32.mrf.mxu0
    %v1653 = vadd.f32 %v1549, %v1652
    %v1654 = vpop.f32.mrf.mxu0
    %1655 = vmatprep.mubr.f32.mxu0 0.0
    %1656 = vmatmul.mubr.f32.gmra.mxu0 %v458
    %v1657 = vpop.f32.mrf.mxu0
    %v1658 = vadd.f32 %v1549, %v1657
    %v1659 = vpop.f32.mrf.mxu0
    %1660 = vmatprep.mubr.f32.mxu0 0.0
    %1661 = vmatmul.mubr.f32.gmra.mxu0 %v463
    %v1662 = vpop.f32.mrf.mxu0
    %v1663 = vadd.f32 %v1549, %v1662
    %v1664 = vpop.f32.mrf.mxu0
    %1665 = vmatprep.mubr.f32.mxu0 0.0
    %1666 = vmatmul.mubr.f32.gmra.mxu0 %v468
    %v1667 = vpop.f32.mrf.mxu0
    %v1668 = vadd.f32 %v1549, %v1667
    %v1669 = vpop.f32.mrf.mxu0
    %1670 = vmatprep.mubr.f32.mxu0 0.0
    %1671 = vmatmul.mubr.f32.gmra.mxu0 %v473
    %v1672 = vpop.f32.mrf.mxu0
    %v1673 = vadd.f32 %v1549, %v1672
    %v1674 = vpop.f32.mrf.mxu0
    %1675 = vmatprep.mubr.f32.mxu0 0.0
    %1676 = vmatmul.mubr.f32.gmra.mxu0 %v478
    %v1677 = vpop.f32.mrf.mxu0
    %v1678 = vadd.f32 %v1549, %v1677
    %v1679 = vpop.f32.mrf.mxu0
    %1680 = vmatprep.mubr.f32.mxu0 0.0
    %1681 = vmatmul.mubr.f32.gmra.mxu0 %v483
    %v1682 = vpop.f32.mrf.mxu0
    %v1683 = vadd.f32 %v1549, %v1682
    %v1684 = vpop.f32.mrf.mxu0
    %1685 = vmatprep.mubr.f32.mxu0 0.0
    %1686 = vmatmul.mubr.f32.gmra.mxu0 %v488
    %v1687 = vpop.f32.mrf.mxu0
    %v1688 = vadd.f32 %v1549, %v1687
    %v1689 = vpop.f32.mrf.mxu0
    %1690 = vmatprep.mubr.f32.mxu0 0.0
    %1691 = vmatmul.mubr.f32.gmra.mxu0 %v493
    %v1692 = vpop.f32.mrf.mxu0
    %v1693 = vadd.f32 %v1549, %v1692
    %v1694 = vpop.f32.mrf.mxu0
    %1695 = vmatprep.mubr.f32.mxu0 0.0
    %1696 = vmatmul.mubr.f32.gmra.mxu0 %v498
    %v1697 = vpop.f32.mrf.mxu0
    %v1698 = vadd.f32 %v1549, %v1697
    %v1699 = vpop.f32.mrf.mxu0
    %1700 = vmatprep.mubr.f32.mxu0 0.0
    %1701 = vmatmul.mubr.f32.gmra.mxu0 %v503
    %v1702 = vpop.f32.mrf.mxu0
    %v1703 = vadd.f32 %v1549, %v1702
    %v1704 = vpop.f32.mrf.mxu0
    %1705 = vmatprep.mubr.f32.mxu0 0.0
    %1706 = vmatmul.mubr.f32.gmra.mxu0 %v508
    %v1707 = vpop.f32.mrf.mxu0
    %v1708 = vadd.f32 %v1549, %v1707
    %v1709 = vpop.f32.mrf.mxu0
    %1710 = vmatprep.mubr.f32.mxu0 0.0
    %1711 = vmatmul.mubr.f32.gmra.mxu0 %v513
    %v1712 = vpop.f32.mrf.mxu0
    %v1713 = vadd.f32 %v1549, %v1712
    %v1714 = vpop.f32.mrf.mxu0
    %1715 = vmatprep.mubr.f32.mxu0 0.0
    %1716 = vmatmul.mubr.f32.gmra.mxu0 %v518
    %v1717 = vpop.f32.mrf.mxu0
    %v1718 = vadd.f32 %v1549, %v1717
    %v1719 = vpop.f32.mrf.mxu0
    %1720 = vmatprep.mubr.f32.mxu0 0.0
    %1721 = vmatmul.mubr.f32.gmra.mxu0 %v523
    %v1722 = vpop.f32.mrf.mxu0
    %v1723 = vadd.f32 %v1549, %v1722
    %v1724 = vpop.f32.mrf.mxu0
    %1725 = vmatprep.mubr.f32.mxu0 0.0
    %1726 = vmatmul.mubr.f32.gmra.mxu0 %v528
    %v1727 = vpop.f32.mrf.mxu0
    %v1728 = vadd.f32 %v1549, %v1727
    %v1729 = vpop.f32.mrf.mxu0
    %1730 = vmatprep.mubr.f32.mxu0 0.0
    %1731 = vmatmul.mubr.f32.gmra.mxu0 %v533
    %v1732 = vpop.f32.mrf.mxu0
    %v1733 = vadd.f32 %v1549, %v1732
    %v1734 = vpop.f32.mrf.mxu0
    %1735 = vmatprep.mubr.f32.mxu0 0.0
    %1736 = vmatmul.mubr.f32.gmra.mxu0 %v538
    %v1737 = vpop.f32.mrf.mxu0
    %v1738 = vadd.f32 %v1549, %v1737
    %v1739 = vpop.f32.mrf.mxu0
    %1740 = vmatprep.mubr.f32.mxu0 0.0
    %1741 = vmatmul.mubr.f32.gmra.mxu0 %v543
    %v1742 = vpop.f32.mrf.mxu0
    %v1743 = vadd.f32 %v1549, %v1742
    %v1744 = vpop.f32.mrf.mxu0
    %1745 = vmatprep.mubr.f32.mxu0 0.0
    %1746 = vmatmul.mubr.f32.gmra.mxu0 %v548
    %v1747 = vpop.f32.mrf.mxu0
    %v1748 = vadd.f32 %v1549, %v1747
    %v1749 = vpop.f32.mrf.mxu0
    %1750 = vmatprep.mubr.f32.mxu0 0.0
    %1751 = vmatmul.mubr.f32.gmra.mxu0 %v553
    %v1752 = vpop.f32.mrf.mxu0
    %v1753 = vadd.f32 %v1549, %v1752
    %v1754 = vpop.f32.mrf.mxu0
    %1755 = vmatprep.mubr.f32.mxu0 0.0
    %1756 = vmatmul.mubr.f32.gmra.mxu0 %v558
    %v1757 = vpop.f32.mrf.mxu0
    %v1758 = vadd.f32 %v1549, %v1757
    %v1759 = vpop.f32.mrf.mxu0
    %1760 = vmatprep.mubr.f32.mxu0 0.0
    %1761 = vmatmul.mubr.f32.gmra.mxu0 %v563
    %v1762 = vpop.f32.mrf.mxu0
    %v1763 = vadd.f32 %v1549, %v1762
    %v1764 = vpop.f32.mrf.mxu0
    %1765 = vmatprep.mubr.f32.mxu0 0.0
    %1766 = vmatmul.mubr.f32.gmra.mxu0 %v568
    %v1767 = vpop.f32.mrf.mxu0
    %v1768 = vadd.f32 %v1549, %v1767
    %v1769 = vpop.f32.mrf.mxu0
    %1770 = vmatprep.mubr.f32.mxu0 0.0
    %1771 = vmatmul.mubr.f32.gmra.mxu0 %v573
    %v1772 = vpop.f32.mrf.mxu0
    %v1773 = vadd.f32 %v1549, %v1772
    %v1774 = vpop.f32.mrf.mxu0
    %1775 = vmatprep.mubr.f32.mxu0 0.0
    %1776 = vmatmul.mubr.f32.gmra.mxu0 %v578
    %v1777 = vpop.f32.mrf.mxu0
    %v1778 = vadd.f32 %v1549, %v1777
    %v1779 = vpop.f32.mrf.mxu0
    %1780 = vmatprep.mubr.f32.mxu0 0.0
    %1781 = vmatmul.mubr.f32.gmra.mxu0 %v583
    %v1782 = vpop.f32.mrf.mxu0
    %v1783 = vadd.f32 %v1549, %v1782
    %v1784 = vpop.f32.mrf.mxu0
    %1785 = vmatprep.mubr.f32.mxu0 0.0
    %1786 = vmatmul.mubr.f32.gmra.mxu0 %v588
    %v1787 = vpop.f32.mrf.mxu0
    %v1788 = vadd.f32 %v1549, %v1787
    %v1789 = vpop.f32.mrf.mxu0
    %1790 = vmatprep.mubr.f32.mxu0 0.0
    %1791 = vmatmul.mubr.f32.gmra.mxu0 %v593
    %v1792 = vpop.f32.mrf.mxu0
    %v1793 = vadd.f32 %v1549, %v1792
    %v1794 = vpop.f32.mrf.mxu0
    %1795 = vmatprep.mubr.f32.mxu0 0.0
    %1796 = vmatmul.mubr.f32.gmra.mxu0 %v598
    %v1797 = vpop.f32.mrf.mxu0
    %v1798 = vadd.f32 %v1549, %v1797
    %v1799 = vpop.f32.mrf.mxu0
    %1800 = vmatprep.mubr.f32.mxu0 0.0
    %1801 = vmatmul.mubr.f32.gmra.mxu0 %v603
    %v1802 = vpop.f32.mrf.mxu0
    %v1803 = vadd.f32 %v1549, %v1802
    %v1804 = vpop.f32.mrf.mxu0
    %1805 = vmatprep.mubr.f32.mxu0 0.0
    %1806 = vmatmul.mubr.f32.gmra.mxu0 %v608
    %v1807 = vpop.f32.mrf.mxu0
    %v1808 = vadd.f32 %v1549, %v1807
    %v1809 = vpop.f32.mrf.mxu0
    %1810 = vmatprep.mubr.f32.mxu0 0.0
    %1811 = vmatmul.mubr.f32.gmra.mxu0 %v613
    %v1812 = vpop.f32.mrf.mxu0
    %v1813 = vadd.f32 %v1549, %v1812
    %v1814 = vpop.f32.mrf.mxu0
    %1815 = vmatprep.mubr.f32.mxu0 0.0
    %1816 = vmatmul.mubr.f32.gmra.mxu0 %v618
    %v1817 = vpop.f32.mrf.mxu0
    %v1818 = vadd.f32 %v1549, %v1817
    %v1819 = vpop.f32.mrf.mxu0
    %1820 = vmatprep.mubr.f32.mxu0 0.0
    %1821 = vmatmul.mubr.f32.gmra.mxu0 %v623
    %v1822 = vpop.f32.mrf.mxu0
    %v1823 = vadd.f32 %v1549, %v1822
    %v1824 = vpop.f32.mrf.mxu0
    %1825 = vmatprep.mubr.f32.mxu0 0.0
    %1826 = vmatmul.mubr.f32.gmra.mxu0 %v628
    %v1827 = vpop.f32.mrf.mxu0
    %v1828 = vadd.f32 %v1549, %v1827
    %v1829 = vpop.f32.mrf.mxu0
    %1830 = vmatprep.mubr.f32.mxu0 0.0
    %1831 = vmatmul.mubr.f32.gmra.mxu0 %v633
    %v1832 = vpop.f32.mrf.mxu0
    %v1833 = vadd.f32 %v1549, %v1832
    %v1834 = vpop.f32.mrf.mxu0
    %1835 = vmatprep.mubr.f32.mxu0 0.0
    %1836 = vmatmul.mubr.f32.gmra.mxu0 %v638
    %v1837 = vpop.f32.mrf.mxu0
    %v1838 = vadd.f32 %v1549, %v1837
    %v1839 = vpop.f32.mrf.mxu0
    %1840 = vmatprep.mubr.f32.mxu0 0.0
    %1841 = vmatmul.mubr.f32.gmra.mxu0 %v643
    %v1842 = vpop.f32.mrf.mxu0
    %v1843 = vadd.f32 %v1549, %v1842
    %v1844 = vpop.f32.mrf.mxu0
    %1845 = vmatprep.mubr.f32.mxu0 0.0
    %1846 = vmatmul.mubr.f32.gmra.mxu0 %v648
    %v1847 = vpop.f32.mrf.mxu0
    %v1848 = vadd.f32 %v1549, %v1847
    %v1849 = vpop.f32.mrf.mxu0
    %1850 = vmatprep.mubr.f32.mxu0 0.0
    %1851 = vmatmul.mubr.f32.gmra.mxu0 %v653
    %v1852 = vpop.f32.mrf.mxu0
    %v1853 = vadd.f32 %v1549, %v1852
    %v1854 = vpop.f32.mrf.mxu0
    %1855 = vmatprep.mubr.f32.mxu0 0.0
    %1856 = vmatmul.mubr.f32.gmra.mxu0 %v658
    %v1857 = vpop.f32.mrf.mxu0
    %v1858 = vadd.f32 %v1549, %v1857
    %v1859 = vpop.f32.mrf.mxu0
    %1860 = vmatprep.mubr.f32.mxu0 0.0
    %1861 = vmatmul.mubr.f32.gmra.mxu0 %v663
    %v1862 = vpop.f32.mrf.mxu0
    %v1863 = vadd.f32 %v1549, %v1862
    %v1864 = vpop.f32.mrf.mxu0
    %1865 = vmatprep.mubr.f32.mxu0 0.0
    %1866 = vmatmul.mubr.f32.gmra.mxu0 %v668
    %v1867 = vpop.f32.mrf.mxu0
    %v1868 = vadd.f32 %v1549, %v1867
    %v1869 = vpop.f32.mrf.mxu0
    %1870 = vmatprep.mubr.f32.mxu0 0.0
    %1871 = vmatmul.mubr.f32.gmra.mxu0 %v673
    %v1872 = vpop.f32.mrf.mxu0
    %v1873 = vadd.f32 %v1549, %v1872
    %v1874 = vpop.f32.mrf.mxu0
    %1875 = vmatprep.mubr.f32.mxu0 0.0
    %1876 = vmatmul.mubr.f32.gmra.mxu0 %v678
    %v1877 = vpop.f32.mrf.mxu0
    %v1878 = vadd.f32 %v1549, %v1877
    %v1879 = vpop.f32.mrf.mxu0
    %1880 = vmatprep.mubr.f32.mxu0 0.0
    %1881 = vmatmul.mubr.f32.gmra.mxu0 %v683
    %v1882 = vpop.f32.mrf.mxu0
    %v1883 = vadd.f32 %v1549, %v1882
    %v1884 = vpop.f32.mrf.mxu0
    %1885 = vmatprep.mubr.f32.mxu0 0.0
    %1886 = vmatmul.mubr.f32.gmra.mxu0 %v688
    %v1887 = vpop.f32.mrf.mxu0
    %v1888 = vadd.f32 %v1549, %v1887
    %v1889 = vpop.f32.mrf.mxu0
    %1890 = vmatprep.mubr.f32.mxu0 0.0
    %1891 = vmatmul.mubr.f32.gmra.mxu0 %v693
    %v1892 = vpop.f32.mrf.mxu0
    %v1893 = vadd.f32 %v1549, %v1892
    %v1894 = vpop.f32.mrf.mxu0
    %1895 = vmatprep.mubr.f32.mxu0 0.0
    %1896 = vmatmul.mubr.f32.gmra.mxu0 %v698
    %v1897 = vpop.f32.mrf.mxu0
    %v1898 = vadd.f32 %v1549, %v1897
    %v1899 = vpop.f32.mrf.mxu0
    %1900 = vmatprep.mubr.f32.mxu0 0.0
    %1901 = vmatmul.mubr.f32.gmra.mxu0 %v703
    %v1902 = vpop.f32.mrf.mxu0
    %v1903 = vadd.f32 %v1549, %v1902
    %v1904 = vpop.f32.mrf.mxu0
    %1905 = vmatprep.mubr.f32.mxu0 0.0
    %1906 = vmatmul.mubr.f32.gmra.mxu0 %v708
    %v1907 = vpop.f32.mrf.mxu0
    %v1908 = vadd.f32 %v1549, %v1907
    %v1909 = vpop.f32.mrf.mxu0
    %1910 = vmatprep.mubr.f32.mxu0 0.0
    %1911 = vmatmul.mubr.f32.gmra.mxu0 %v713
    %v1912 = vpop.f32.mrf.mxu0
    %v1913 = vadd.f32 %v1549, %v1912
    %v1914 = vpop.f32.mrf.mxu0
    %1915 = vmatprep.mubr.f32.mxu0 0.0
    %1916 = vmatmul.mubr.f32.gmra.mxu0 %v718
    %v1917 = vpop.f32.mrf.mxu0
    %v1918 = vadd.f32 %v1549, %v1917
    %v1919 = vpop.f32.mrf.mxu0
    %1920 = vmatprep.mubr.f32.mxu0 0.0
    %1921 = vmatmul.mubr.f32.gmra.mxu0 %v723
    %v1922 = vpop.f32.mrf.mxu0
    %v1923 = vadd.f32 %v1549, %v1922
    %v1924 = vpop.f32.mrf.mxu0
    %1925 = vmatprep.mubr.f32.mxu0 0.0
    %1926 = vmatmul.mubr.f32.gmra.mxu0 %v728
    %v1927 = vpop.f32.mrf.mxu0
    %v1928 = vadd.f32 %v1549, %v1927
    %v1929 = vpop.f32.mrf.mxu0
    %1930 = vmatprep.mubr.f32.mxu0 0.0
    %1931 = vmatmul.mubr.f32.gmra.mxu0 %v733
    %v1932 = vpop.f32.mrf.mxu0
    %v1933 = vadd.f32 %v1549, %v1932
    %v1934 = vpop.f32.mrf.mxu0
    %1935 = vdwg.mxu0
    %v1936 = vld [vmem:[%s1] sm:$0xff]
    %v1937 = vld [vmem:[%s1 + $0x8] sm:$0xff]
    %v1938 = vld [vmem:[%s1 + $0x10] sm:$0xff]
    %v1939 = vld [vmem:[%s1 + $0x18] sm:$0xff]
    %v1940 = vld [vmem:[%s1 + $0x20] sm:$0xff]
    %v1941 = vld [vmem:[%s1 + $0x28] sm:$0xff]
    %v1942 = vld [vmem:[%s1 + $0x30] sm:$0xff]
    %v1943 = vld [vmem:[%s1 + $0x38] sm:$0xff]
    %v1944 = vld [vmem:[%s1 + $0x40] sm:$0xff]
    %v1945 = vld [vmem:[%s1 + $0x48] sm:$0xff]
    %v1946 = vld [vmem:[%s1 + $0x50] sm:$0xff]
    %v1947 = vld [vmem:[%s1 + $0x58] sm:$0xff]
    %v1948 = vld [vmem:[%s1 + $0x60] sm:$0xff]
    %v1949 = vld [vmem:[%s1 + $0x68] sm:$0xff]
    %v1950 = vld [vmem:[%s1 + $0x70] sm:$0xff]
    %v1951 = vld [vmem:[%s1 + $0x78] sm:$0xff]
    %v1952 = vld [vmem:[%s1 + $0x80] sm:$0xff]
    %v1953 = vld [vmem:[%s1 + $0x88] sm:$0xff]
    %v1954 = vld [vmem:[%s1 + $0x90] sm:$0xff]
    %v1955 = vld [vmem:[%s1 + $0x98] sm:$0xff]
    %v1956 = vld [vmem:[%s1 + $0xa0] sm:$0xff]
    %v1957 = vld [vmem:[%s1 + $0xa8] sm:$0xff]
    %v1958 = vld [vmem:[%s1 + $0xb0] sm:$0xff]
    %v1959 = vld [vmem:[%s1 + $0xb8] sm:$0xff]
    %v1960 = vld [vmem:[%s1 + $0xc0] sm:$0xff]
    %v1961 = vld [vmem:[%s1 + $0xc8] sm:$0xff]
    %v1962 = vld [vmem:[%s1 + $0xd0] sm:$0xff]
    %v1963 = vld [vmem:[%s1 + $0xd8] sm:$0xff]
    %v1964 = vld [vmem:[%s1 + $0xe0] sm:$0xff]
    %v1965 = vld [vmem:[%s1 + $0xe8] sm:$0xff]
    %v1966 = vld [vmem:[%s1 + $0xf0] sm:$0xff]
    %v1967 = vld [vmem:[%s1 + $0xf8] sm:$0xff]
    %v1968 = vld [vmem:[%s1 + $0x100] sm:$0xff]
    %v1969 = vld [vmem:[%s1 + $0x108] sm:$0xff]
    %v1970 = vld [vmem:[%s1 + $0x110] sm:$0xff]
    %v1971 = vld [vmem:[%s1 + $0x118] sm:$0xff]
    %v1972 = vld [vmem:[%s1 + $0x120] sm:$0xff]
    %v1973 = vld [vmem:[%s1 + $0x128] sm:$0xff]
    %v1974 = vld [vmem:[%s1 + $0x130] sm:$0xff]
    %v1975 = vld [vmem:[%s1 + $0x138] sm:$0xff]
    %v1976 = vld [vmem:[%s1 + $0x140] sm:$0xff]
    %v1977 = vld [vmem:[%s1 + $0x148] sm:$0xff]
    %v1978 = vld [vmem:[%s1 + $0x150] sm:$0xff]
    %v1979 = vld [vmem:[%s1 + $0x158] sm:$0xff]
    %v1980 = vld [vmem:[%s1 + $0x160] sm:$0xff]
    %v1981 = vld [vmem:[%s1 + $0x168] sm:$0xff]
    %v1982 = vld [vmem:[%s1 + $0x170] sm:$0xff]
    %v1983 = vld [vmem:[%s1 + $0x178] sm:$0xff]
    %v1984 = vld [vmem:[%s1 + $0x180] sm:$0xff]
    %v1985 = vld [vmem:[%s1 + $0x188] sm:$0xff]
    %v1986 = vld [vmem:[%s1 + $0x190] sm:$0xff]
    %v1987 = vld [vmem:[%s1 + $0x198] sm:$0xff]
    %v1988 = vld [vmem:[%s1 + $0x1a0] sm:$0xff]
    %v1989 = vld [vmem:[%s1 + $0x1a8] sm:$0xff]
    %v1990 = vld [vmem:[%s1 + $0x1b0] sm:$0xff]
    %v1991 = vld [vmem:[%s1 + $0x1b8] sm:$0xff]
    %v1992 = vld [vmem:[%s1 + $0x1c0] sm:$0xff]
    %v1993 = vld [vmem:[%s1 + $0x1c8] sm:$0xff]
    %v1994 = vld [vmem:[%s1 + $0x1d0] sm:$0xff]
    %v1995 = vld [vmem:[%s1 + $0x1d8] sm:$0xff]
    %v1996 = vld [vmem:[%s1 + $0x1e0] sm:$0xff]
    %v1997 = vld [vmem:[%s1 + $0x1e8] sm:$0xff]
    %v1998 = vld [vmem:[%s1 + $0x1f0] sm:$0xff]
    %v1999 = vld [vmem:[%s1 + $0x1f8] sm:$0xff]
    %v2000 = vmul.f32 %v1936, 16.0
    %v2001 = vmul.f32 %v1937, 16.0
    %v2002 = vmul.f32 %v1938, 16.0
    %v2003 = vmul.f32 %v1939, 16.0
    %v2004 = vmul.f32 %v1940, 16.0
    %v2005 = vmul.f32 %v1941, 16.0
    %v2006 = vmul.f32 %v1942, 16.0
    %v2007 = vmul.f32 %v1943, 16.0
    %v2008 = vmul.f32 %v1944, 16.0
    %v2009 = vmul.f32 %v1945, 16.0
    %v2010 = vmul.f32 %v1946, 16.0
    %v2011 = vmul.f32 %v1947, 16.0
    %v2012 = vmul.f32 %v1948, 16.0
    %v2013 = vmul.f32 %v1949, 16.0
    %v2014 = vmul.f32 %v1950, 16.0
    %v2015 = vmul.f32 %v1951, 16.0
    %v2016 = vmul.f32 %v1952, 16.0
    %v2017 = vmul.f32 %v1953, 16.0
    %v2018 = vmul.f32 %v1954, 16.0
    %v2019 = vmul.f32 %v1955, 16.0
    %v2020 = vmul.f32 %v1956, 16.0
    %v2021 = vmul.f32 %v1957, 16.0
    %v2022 = vmul.f32 %v1958, 16.0
    %v2023 = vmul.f32 %v1959, 16.0
    %v2024 = vmul.f32 %v1960, 16.0
    %v2025 = vmul.f32 %v1961, 16.0
    %v2026 = vmul.f32 %v1962, 16.0
    %v2027 = vmul.f32 %v1963, 16.0
    %v2028 = vmul.f32 %v1964, 16.0
    %v2029 = vmul.f32 %v1965, 16.0
    %v2030 = vmul.f32 %v1966, 16.0
    %v2031 = vmul.f32 %v1967, 16.0
    %v2032 = vmul.f32 %v1968, 16.0
    %v2033 = vmul.f32 %v1969, 16.0
    %v2034 = vmul.f32 %v1970, 16.0
    %v2035 = vmul.f32 %v1971, 16.0
    %v2036 = vmul.f32 %v1972, 16.0
    %v2037 = vmul.f32 %v1973, 16.0
    %v2038 = vmul.f32 %v1974, 16.0
    %v2039 = vmul.f32 %v1975, 16.0
    %v2040 = vmul.f32 %v1976, 16.0
    %v2041 = vmul.f32 %v1977, 16.0
    %v2042 = vmul.f32 %v1978, 16.0
    %v2043 = vmul.f32 %v1979, 16.0
    %v2044 = vmul.f32 %v1980, 16.0
    %v2045 = vmul.f32 %v1981, 16.0
    %v2046 = vmul.f32 %v1982, 16.0
    %v2047 = vmul.f32 %v1983, 16.0
    %v2048 = vmul.f32 %v1984, 16.0
    %v2049 = vmul.f32 %v1985, 16.0
    %v2050 = vmul.f32 %v1986, 16.0
    %v2051 = vmul.f32 %v1987, 16.0
    %v2052 = vmul.f32 %v1988, 16.0
    %v2053 = vmul.f32 %v1989, 16.0
    %v2054 = vmul.f32 %v1990, 16.0
    %v2055 = vmul.f32 %v1991, 16.0
    %v2056 = vmul.f32 %v1992, 16.0
    %v2057 = vmul.f32 %v1993, 16.0
    %v2058 = vmul.f32 %v1994, 16.0
    %v2059 = vmul.f32 %v1995, 16.0
    %v2060 = vmul.f32 %v1996, 16.0
    %v2061 = vmul.f32 %v1997, 16.0
    %v2062 = vmul.f32 %v1998, 16.0
    %v2063 = vmul.f32 %v1999, 16.0
    %v2064 = vadd.f32 %v2000, %v1618
    %v2065 = vadd.f32 %v2001, %v1623
    %v2066 = vadd.f32 %v2002, %v1628
    %v2067 = vadd.f32 %v2003, %v1633
    %v2068 = vadd.f32 %v2004, %v1638
    %v2069 = vadd.f32 %v2005, %v1643
    %v2070 = vadd.f32 %v2006, %v1648
    %v2071 = vadd.f32 %v2007, %v1653
    %v2072 = vadd.f32 %v2008, %v1658
    %v2073 = vadd.f32 %v2009, %v1663
    %v2074 = vadd.f32 %v2010, %v1668
    %v2075 = vadd.f32 %v2011, %v1673
    %v2076 = vadd.f32 %v2012, %v1678
    %v2077 = vadd.f32 %v2013, %v1683
    %v2078 = vadd.f32 %v2014, %v1688
    %v2079 = vadd.f32 %v2015, %v1693
    %v2080 = vadd.f32 %v2016, %v1698
    %v2081 = vadd.f32 %v2017, %v1703
    %v2082 = vadd.f32 %v2018, %v1708
    %v2083 = vadd.f32 %v2019, %v1713
    %v2084 = vadd.f32 %v2020, %v1718
    %v2085 = vadd.f32 %v2021, %v1723
    %v2086 = vadd.f32 %v2022, %v1728
    %v2087 = vadd.f32 %v2023, %v1733
    %v2088 = vadd.f32 %v2024, %v1738
    %v2089 = vadd.f32 %v2025, %v1743
    %v2090 = vadd.f32 %v2026, %v1748
    %v2091 = vadd.f32 %v2027, %v1753
    %v2092 = vadd.f32 %v2028, %v1758
    %v2093 = vadd.f32 %v2029, %v1763
    %v2094 = vadd.f32 %v2030, %v1768
    %v2095 = vadd.f32 %v2031, %v1773
    %v2096 = vadd.f32 %v2032, %v1778
    %v2097 = vadd.f32 %v2033, %v1783
    %v2098 = vadd.f32 %v2034, %v1788
    %v2099 = vadd.f32 %v2035, %v1793
    %v2100 = vadd.f32 %v2036, %v1798
    %v2101 = vadd.f32 %v2037, %v1803
    %v2102 = vadd.f32 %v2038, %v1808
    %v2103 = vadd.f32 %v2039, %v1813
    %v2104 = vadd.f32 %v2040, %v1818
    %v2105 = vadd.f32 %v2041, %v1823
    %v2106 = vadd.f32 %v2042, %v1828
    %v2107 = vadd.f32 %v2043, %v1833
    %v2108 = vadd.f32 %v2044, %v1838
    %v2109 = vadd.f32 %v2045, %v1843
    %v2110 = vadd.f32 %v2046, %v1848
    %v2111 = vadd.f32 %v2047, %v1853
    %v2112 = vadd.f32 %v2048, %v1858
    %v2113 = vadd.f32 %v2049, %v1863
    %v2114 = vadd.f32 %v2050, %v1868
    %v2115 = vadd.f32 %v2051, %v1873
    %v2116 = vadd.f32 %v2052, %v1878
    %v2117 = vadd.f32 %v2053, %v1883
    %v2118 = vadd.f32 %v2054, %v1888
    %v2119 = vadd.f32 %v2055, %v1893
    %v2120 = vadd.f32 %v2056, %v1898
    %v2121 = vadd.f32 %v2057, %v1903
    %v2122 = vadd.f32 %v2058, %v1908
    %v2123 = vadd.f32 %v2059, %v1913
    %v2124 = vadd.f32 %v2060, %v1918
    %v2125 = vadd.f32 %v2061, %v1923
    %v2126 = vadd.f32 %v2062, %v1928
    %v2127 = vadd.f32 %v2063, %v1933
    %v2128 = vsub.f32 %v2064, 0.5
    %v2129 = vsub.f32 %v2065, 0.5
    %v2130 = vsub.f32 %v2066, 0.5
    %v2131 = vsub.f32 %v2067, 0.5
    %v2132 = vsub.f32 %v2068, 0.5
    %v2133 = vsub.f32 %v2069, 0.5
    %v2134 = vsub.f32 %v2070, 0.5
    %v2135 = vsub.f32 %v2071, 0.5
    %v2136 = vsub.f32 %v2072, 0.5
    %v2137 = vsub.f32 %v2073, 0.5
    %v2138 = vsub.f32 %v2074, 0.5
    %v2139 = vsub.f32 %v2075, 0.5
    %v2140 = vsub.f32 %v2076, 0.5
    %v2141 = vsub.f32 %v2077, 0.5
    %v2142 = vsub.f32 %v2078, 0.5
    %v2143 = vsub.f32 %v2079, 0.5
    %v2144 = vsub.f32 %v2080, 0.5
    %v2145 = vsub.f32 %v2081, 0.5
    %v2146 = vsub.f32 %v2082, 0.5
    %v2147 = vsub.f32 %v2083, 0.5
    %v2148 = vsub.f32 %v2084, 0.5
    %v2149 = vsub.f32 %v2085, 0.5
    %v2150 = vsub.f32 %v2086, 0.5
    %v2151 = vsub.f32 %v2087, 0.5
    %v2152 = vsub.f32 %v2088, 0.5
    %v2153 = vsub.f32 %v2089, 0.5
    %v2154 = vsub.f32 %v2090, 0.5
    %v2155 = vsub.f32 %v2091, 0.5
    %v2156 = vsub.f32 %v2092, 0.5
    %v2157 = vsub.f32 %v2093, 0.5
    %v2158 = vsub.f32 %v2094, 0.5
    %v2159 = vsub.f32 %v2095, 0.5
    %v2160 = vsub.f32 %v2096, 0.5
    %v2161 = vsub.f32 %v2097, 0.5
    %v2162 = vsub.f32 %v2098, 0.5
    %v2163 = vsub.f32 %v2099, 0.5
    %v2164 = vsub.f32 %v2100, 0.5
    %v2165 = vsub.f32 %v2101, 0.5
    %v2166 = vsub.f32 %v2102, 0.5
    %v2167 = vsub.f32 %v2103, 0.5
    %v2168 = vsub.f32 %v2104, 0.5
    %v2169 = vsub.f32 %v2105, 0.5
    %v2170 = vsub.f32 %v2106, 0.5
    %v2171 = vsub.f32 %v2107, 0.5
    %v2172 = vsub.f32 %v2108, 0.5
    %v2173 = vsub.f32 %v2109, 0.5
    %v2174 = vsub.f32 %v2110, 0.5
    %v2175 = vsub.f32 %v2111, 0.5
    %v2176 = vsub.f32 %v2112, 0.5
    %v2177 = vsub.f32 %v2113, 0.5
    %v2178 = vsub.f32 %v2114, 0.5
    %v2179 = vsub.f32 %v2115, 0.5
    %v2180 = vsub.f32 %v2116, 0.5
    %v2181 = vsub.f32 %v2117, 0.5
    %v2182 = vsub.f32 %v2118, 0.5
    %v2183 = vsub.f32 %v2119, 0.5
    %v2184 = vsub.f32 %v2120, 0.5
    %v2185 = vsub.f32 %v2121, 0.5
    %v2186 = vsub.f32 %v2122, 0.5
    %v2187 = vsub.f32 %v2123, 0.5
    %v2188 = vsub.f32 %v2124, 0.5
    %v2189 = vsub.f32 %v2125, 0.5
    %v2190 = vsub.f32 %v2126, 0.5
    %v2191 = vsub.f32 %v2127, 0.5
    %2192 = vst [vmem:[#allocation8] sm:$0xff] %v418
    %2193 = vst [vmem:[#allocation8 + $0x8] sm:$0xff] %v423
    %2194 = vst [vmem:[#allocation8 + $0x10] sm:$0xff] %v428
    %2195 = vst [vmem:[#allocation8 + $0x18] sm:$0xff] %v433
    %2196 = vst [vmem:[#allocation8 + $0x20] sm:$0xff] %v438
    %2197 = vst [vmem:[#allocation8 + $0x28] sm:$0xff] %v443
    %2198 = vst [vmem:[#allocation8 + $0x30] sm:$0xff] %v448
    %2199 = vst [vmem:[#allocation8 + $0x38] sm:$0xff] %v453
    %2200 = vst [vmem:[#allocation8 + $0x40] sm:$0xff] %v458
    %2201 = vst [vmem:[#allocation8 + $0x48] sm:$0xff] %v463
    %2202 = vst [vmem:[#allocation8 + $0x50] sm:$0xff] %v468
    %2203 = vst [vmem:[#allocation8 + $0x58] sm:$0xff] %v473
    %2204 = vst [vmem:[#allocation8 + $0x60] sm:$0xff] %v478
    %2205 = vst [vmem:[#allocation8 + $0x68] sm:$0xff] %v483
    %2206 = vst [vmem:[#allocation8 + $0x70] sm:$0xff] %v488
    %2207 = vst [vmem:[#allocation8 + $0x78] sm:$0xff] %v493
    %2208 = vst [vmem:[#allocation8 + $0x80] sm:$0xff] %v498
    %2209 = vst [vmem:[#allocation8 + $0x88] sm:$0xff] %v503
    %2210 = vst [vmem:[#allocation8 + $0x90] sm:$0xff] %v508
    %2211 = vst [vmem:[#allocation8 + $0x98] sm:$0xff] %v513
    %2212 = vst [vmem:[#allocation8 + $0xa0] sm:$0xff] %v518
    %2213 = vst [vmem:[#allocation8 + $0xa8] sm:$0xff] %v523
    %2214 = vst [vmem:[#allocation8 + $0xb0] sm:$0xff] %v528
    %2215 = vst [vmem:[#allocation8 + $0xb8] sm:$0xff] %v533
    %2216 = vst [vmem:[#allocation8 + $0xc0] sm:$0xff] %v538
    %2217 = vst [vmem:[#allocation8 + $0xc8] sm:$0xff] %v543
    %2218 = vst [vmem:[#allocation8 + $0xd0] sm:$0xff] %v548
    %2219 = vst [vmem:[#allocation8 + $0xd8] sm:$0xff] %v553
    %2220 = vst [vmem:[#allocation8 + $0xe0] sm:$0xff] %v558
    %2221 = vst [vmem:[#allocation8 + $0xe8] sm:$0xff] %v563
    %2222 = vst [vmem:[#allocation8 + $0xf0] sm:$0xff] %v568
    %2223 = vst [vmem:[#allocation8 + $0xf8] sm:$0xff] %v573
    %2224 = vst [vmem:[#allocation8 + $0x100] sm:$0xff] %v578
    %2225 = vst [vmem:[#allocation8 + $0x108] sm:$0xff] %v583
    %2226 = vst [vmem:[#allocation8 + $0x110] sm:$0xff] %v588
    %2227 = vst [vmem:[#allocation8 + $0x118] sm:$0xff] %v593
    %2228 = vst [vmem:[#allocation8 + $0x120] sm:$0xff] %v598
    %2229 = vst [vmem:[#allocation8 + $0x128] sm:$0xff] %v603
    %2230 = vst [vmem:[#allocation8 + $0x130] sm:$0xff] %v608
    %2231 = vst [vmem:[#allocation8 + $0x138] sm:$0xff] %v613
    %2232 = vst [vmem:[#allocation8 + $0x140] sm:$0xff] %v618
    %2233 = vst [vmem:[#allocation8 + $0x148] sm:$0xff] %v623
    %2234 = vst [vmem:[#allocation8 + $0x150] sm:$0xff] %v628
    %2235 = vst [vmem:[#allocation8 + $0x158] sm:$0xff] %v633
    %2236 = vst [vmem:[#allocation8 + $0x160] sm:$0xff] %v638
    %2237 = vst [vmem:[#allocation8 + $0x168] sm:$0xff] %v643
    %2238 = vst [vmem:[#allocation8 + $0x170] sm:$0xff] %v648
    %2239 = vst [vmem:[#allocation8 + $0x178] sm:$0xff] %v653
    %2240 = vst [vmem:[#allocation8 + $0x180] sm:$0xff] %v658
    %2241 = vst [vmem:[#allocation8 + $0x188] sm:$0xff] %v663
    %2242 = vst [vmem:[#allocation8 + $0x190] sm:$0xff] %v668
    %2243 = vst [vmem:[#allocation8 + $0x198] sm:$0xff] %v673
    %2244 = vst [vmem:[#allocation8 + $0x1a0] sm:$0xff] %v678
    %2245 = vst [vmem:[#allocation8 + $0x1a8] sm:$0xff] %v683
    %2246 = vst [vmem:[#allocation8 + $0x1b0] sm:$0xff] %v688
    %2247 = vst [vmem:[#allocation8 + $0x1b8] sm:$0xff] %v693
    %2248 = vst [vmem:[#allocation8 + $0x1c0] sm:$0xff] %v698
    %2249 = vst [vmem:[#allocation8 + $0x1c8] sm:$0xff] %v703
    %2250 = vst [vmem:[#allocation8 + $0x1d0] sm:$0xff] %v708
    %2251 = vst [vmem:[#allocation8 + $0x1d8] sm:$0xff] %v713
    %2252 = vst [vmem:[#allocation8 + $0x1e0] sm:$0xff] %v718
    %2253 = vst [vmem:[#allocation8 + $0x1e8] sm:$0xff] %v723
    %2254 = vst [vmem:[#allocation8 + $0x1f0] sm:$0xff] %v728
    %2255 = vst [vmem:[#allocation8 + $0x1f8] sm:$0xff] %v733
    %2256 = vst [vmem:[#allocation9] sm:$0xff] %v814
    %2257 = vst [vmem:[#allocation9 + $0x8] sm:$0xff] %v819
    %2258 = vst [vmem:[#allocation9 + $0x10] sm:$0xff] %v824
    %2259 = vst [vmem:[#allocation9 + $0x18] sm:$0xff] %v829
    %2260 = vst [vmem:[#allocation9 + $0x20] sm:$0xff] %v834
    %2261 = vst [vmem:[#allocation9 + $0x28] sm:$0xff] %v839
    %2262 = vst [vmem:[#allocation9 + $0x30] sm:$0xff] %v844
    %2263 = vst [vmem:[#allocation9 + $0x38] sm:$0xff] %v849
    %2264 = vst [vmem:[#allocation9 + $0x40] sm:$0xff] %v854
    %2265 = vst [vmem:[#allocation9 + $0x48] sm:$0xff] %v859
    %2266 = vst [vmem:[#allocation9 + $0x50] sm:$0xff] %v864
    %2267 = vst [vmem:[#allocation9 + $0x58] sm:$0xff] %v869
    %2268 = vst [vmem:[#allocation9 + $0x60] sm:$0xff] %v874
    %2269 = vst [vmem:[#allocation9 + $0x68] sm:$0xff] %v879
    %2270 = vst [vmem:[#allocation9 + $0x70] sm:$0xff] %v884
    %2271 = vst [vmem:[#allocation9 + $0x78] sm:$0xff] %v889
    %2272 = vst [vmem:[#allocation9 + $0x80] sm:$0xff] %v894
    %2273 = vst [vmem:[#allocation9 + $0x88] sm:$0xff] %v899
    %2274 = vst [vmem:[#allocation9 + $0x90] sm:$0xff] %v904
    %2275 = vst [vmem:[#allocation9 + $0x98] sm:$0xff] %v909
    %2276 = vst [vmem:[#allocation9 + $0xa0] sm:$0xff] %v914
    %2277 = vst [vmem:[#allocation9 + $0xa8] sm:$0xff] %v919
    %2278 = vst [vmem:[#allocation9 + $0xb0] sm:$0xff] %v924
    %2279 = vst [vmem:[#allocation9 + $0xb8] sm:$0xff] %v929
    %2280 = vst [vmem:[#allocation9 + $0xc0] sm:$0xff] %v934
    %2281 = vst [vmem:[#allocation9 + $0xc8] sm:$0xff] %v939
    %2282 = vst [vmem:[#allocation9 + $0xd0] sm:$0xff] %v944
    %2283 = vst [vmem:[#allocation9 + $0xd8] sm:$0xff] %v949
    %2284 = vst [vmem:[#allocation9 + $0xe0] sm:$0xff] %v954
    %2285 = vst [vmem:[#allocation9 + $0xe8] sm:$0xff] %v959
    %2286 = vst [vmem:[#allocation9 + $0xf0] sm:$0xff] %v964
    %2287 = vst [vmem:[#allocation9 + $0xf8] sm:$0xff] %v969
    %2288 = vst [vmem:[#allocation9 + $0x100] sm:$0xff] %v974
    %2289 = vst [vmem:[#allocation9 + $0x108] sm:$0xff] %v979
    %2290 = vst [vmem:[#allocation9 + $0x110] sm:$0xff] %v984
    %2291 = vst [vmem:[#allocation9 + $0x118] sm:$0xff] %v989
    %2292 = vst [vmem:[#allocation9 + $0x120] sm:$0xff] %v994
    %2293 = vst [vmem:[#allocation9 + $0x128] sm:$0xff] %v999
    %2294 = vst [vmem:[#allocation9 + $0x130] sm:$0xff] %v1004
    %2295 = vst [vmem:[#allocation9 + $0x138] sm:$0xff] %v1009
    %2296 = vst [vmem:[#allocation9 + $0x140] sm:$0xff] %v1014
    %2297 = vst [vmem:[#allocation9 + $0x148] sm:$0xff] %v1019
    %2298 = vst [vmem:[#allocation9 + $0x150] sm:$0xff] %v1024
    %2299 = vst [vmem:[#allocation9 + $0x158] sm:$0xff] %v1029
    %2300 = vst [vmem:[#allocation9 + $0x160] sm:$0xff] %v1034
    %2301 = vst [vmem:[#allocation9 + $0x168] sm:$0xff] %v1039
    %2302 = vst [vmem:[#allocation9 + $0x170] sm:$0xff] %v1044
    %2303 = vst [vmem:[#allocation9 + $0x178] sm:$0xff] %v1049
    %2304 = vst [vmem:[#allocation9 + $0x180] sm:$0xff] %v1054
    %2305 = vst [vmem:[#allocation9 + $0x188] sm:$0xff] %v1059
    %2306 = vst [vmem:[#allocation9 + $0x190] sm:$0xff] %v1064
    %2307 = vst [vmem:[#allocation9 + $0x198] sm:$0xff] %v1069
    %2308 = vst [vmem:[#allocation9 + $0x1a0] sm:$0xff] %v1074
    %2309 = vst [vmem:[#allocation9 + $0x1a8] sm:$0xff] %v1079
    %2310 = vst [vmem:[#allocation9 + $0x1b0] sm:$0xff] %v1084
    %2311 = vst [vmem:[#allocation9 + $0x1b8] sm:$0xff] %v1089
    %2312 = vst [vmem:[#allocation9 + $0x1c0] sm:$0xff] %v1094
    %2313 = vst [vmem:[#allocation9 + $0x1c8] sm:$0xff] %v1099
    %2314 = vst [vmem:[#allocation9 + $0x1d0] sm:$0xff] %v1104
    %2315 = vst [vmem:[#allocation9 + $0x1d8] sm:$0xff] %v1109
    %2316 = vst [vmem:[#allocation9 + $0x1e0] sm:$0xff] %v1114
    %2317 = vst [vmem:[#allocation9 + $0x1e8] sm:$0xff] %v1119
    %2318 = vst [vmem:[#allocation9 + $0x1f0] sm:$0xff] %v1124
    %2319 = vst [vmem:[#allocation9 + $0x1f8] sm:$0xff] %v1129
    %2320 = vst [vmem:[#allocation11] sm:$0xff] %v1210
    %2321 = vst [vmem:[#allocation11 + $0x8] sm:$0xff] %v1215
    %2322 = vst [vmem:[#allocation11 + $0x10] sm:$0xff] %v1220
    %2323 = vst [vmem:[#allocation11 + $0x18] sm:$0xff] %v1225
    %2324 = vst [vmem:[#allocation11 + $0x20] sm:$0xff] %v1230
    %2325 = vst [vmem:[#allocation11 + $0x28] sm:$0xff] %v1235
    %2326 = vst [vmem:[#allocation11 + $0x30] sm:$0xff] %v1240
    %2327 = vst [vmem:[#allocation11 + $0x38] sm:$0xff] %v1245
    %2328 = vst [vmem:[#allocation11 + $0x40] sm:$0xff] %v1250
    %2329 = vst [vmem:[#allocation11 + $0x48] sm:$0xff] %v1255
    %2330 = vst [vmem:[#allocation11 + $0x50] sm:$0xff] %v1260
    %2331 = vst [vmem:[#allocation11 + $0x58] sm:$0xff] %v1265
    %2332 = vst [vmem:[#allocation11 + $0x60] sm:$0xff] %v1270
    %2333 = vst [vmem:[#allocation11 + $0x68] sm:$0xff] %v1275
    %2334 = vst [vmem:[#allocation11 + $0x70] sm:$0xff] %v1280
    %2335 = vst [vmem:[#allocation11 + $0x78] sm:$0xff] %v1285
    %2336 = vst [vmem:[#allocation11 + $0x80] sm:$0xff] %v1290
    %2337 = vst [vmem:[#allocation11 + $0x88] sm:$0xff] %v1295
    %2338 = vst [vmem:[#allocation11 + $0x90] sm:$0xff] %v1300
    %2339 = vst [vmem:[#allocation11 + $0x98] sm:$0xff] %v1305
    %2340 = vst [vmem:[#allocation11 + $0xa0] sm:$0xff] %v1310
    %2341 = vst [vmem:[#allocation11 + $0xa8] sm:$0xff] %v1315
    %2342 = vst [vmem:[#allocation11 + $0xb0] sm:$0xff] %v1320
    %2343 = vst [vmem:[#allocation11 + $0xb8] sm:$0xff] %v1325
    %2344 = vst [vmem:[#allocation11 + $0xc0] sm:$0xff] %v1330
    %2345 = vst [vmem:[#allocation11 + $0xc8] sm:$0xff] %v1335
    %2346 = vst [vmem:[#allocation11 + $0xd0] sm:$0xff] %v1340
    %2347 = vst [vmem:[#allocation11 + $0xd8] sm:$0xff] %v1345
    %2348 = vst [vmem:[#allocation11 + $0xe0] sm:$0xff] %v1350
    %2349 = vst [vmem:[#allocation11 + $0xe8] sm:$0xff] %v1355
    %2350 = vst [vmem:[#allocation11 + $0xf0] sm:$0xff] %v1360
    %2351 = vst [vmem:[#allocation11 + $0xf8] sm:$0xff] %v1365
    %2352 = vst [vmem:[#allocation11 + $0x100] sm:$0xff] %v1370
    %2353 = vst [vmem:[#allocation11 + $0x108] sm:$0xff] %v1375
    %2354 = vst [vmem:[#allocation11 + $0x110] sm:$0xff] %v1380
    %2355 = vst [vmem:[#allocation11 + $0x118] sm:$0xff] %v1385
    %2356 = vst [vmem:[#allocation11 + $0x120] sm:$0xff] %v1390
    %2357 = vst [vmem:[#allocation11 + $0x128] sm:$0xff] %v1395
    %2358 = vst [vmem:[#allocation11 + $0x130] sm:$0xff] %v1400
    %2359 = vst [vmem:[#allocation11 + $0x138] sm:$0xff] %v1405
    %2360 = vst [vmem:[#allocation11 + $0x140] sm:$0xff] %v1410
    %2361 = vst [vmem:[#allocation11 + $0x148] sm:$0xff] %v1415
    %2362 = vst [vmem:[#allocation11 + $0x150] sm:$0xff] %v1420
    %2363 = vst [vmem:[#allocation11 + $0x158] sm:$0xff] %v1425
    %2364 = vst [vmem:[#allocation11 + $0x160] sm:$0xff] %v1430
    %2365 = vst [vmem:[#allocation11 + $0x168] sm:$0xff] %v1435
    %2366 = vst [vmem:[#allocation11 + $0x170] sm:$0xff] %v1440
    %2367 = vst [vmem:[#allocation11 + $0x178] sm:$0xff] %v1445
    %2368 = vst [vmem:[#allocation11 + $0x180] sm:$0xff] %v1450
    %2369 = vst [vmem:[#allocation11 + $0x188] sm:$0xff] %v1455
    %2370 = vst [vmem:[#allocation11 + $0x190] sm:$0xff] %v1460
    %2371 = vst [vmem:[#allocation11 + $0x198] sm:$0xff] %v1465
    %2372 = vst [vmem:[#allocation11 + $0x1a0] sm:$0xff] %v1470
    %2373 = vst [vmem:[#allocation11 + $0x1a8] sm:$0xff] %v1475
    %2374 = vst [vmem:[#allocation11 + $0x1b0] sm:$0xff] %v1480
    %2375 = vst [vmem:[#allocation11 + $0x1b8] sm:$0xff] %v1485
    %2376 = vst [vmem:[#allocation11 + $0x1c0] sm:$0xff] %v1490
    %2377 = vst [vmem:[#allocation11 + $0x1c8] sm:$0xff] %v1495
    %2378 = vst [vmem:[#allocation11 + $0x1d0] sm:$0xff] %v1500
    %2379 = vst [vmem:[#allocation11 + $0x1d8] sm:$0xff] %v1505
    %2380 = vst [vmem:[#allocation11 + $0x1e0] sm:$0xff] %v1510
    %2381 = vst [vmem:[#allocation11 + $0x1e8] sm:$0xff] %v1515
    %2382 = vst [vmem:[#allocation11 + $0x1f0] sm:$0xff] %v1520
    %2383 = vst [vmem:[#allocation11 + $0x1f8] sm:$0xff] %v1525
    %2384 = vst [vmem:[#allocation12] sm:$0xff] %v2128
    %2385 = vst [vmem:[#allocation12 + $0x8] sm:$0xff] %v2129
    %2386 = vst [vmem:[#allocation12 + $0x10] sm:$0xff] %v2130
    %2387 = vst [vmem:[#allocation12 + $0x18] sm:$0xff] %v2131
    %2388 = vst [vmem:[#allocation12 + $0x20] sm:$0xff] %v2132
    %2389 = vst [vmem:[#allocation12 + $0x28] sm:$0xff] %v2133
    %2390 = vst [vmem:[#allocation12 + $0x30] sm:$0xff] %v2134
    %2391 = vst [vmem:[#allocation12 + $0x38] sm:$0xff] %v2135
    %2392 = vst [vmem:[#allocation12 + $0x40] sm:$0xff] %v2136
    %2393 = vst [vmem:[#allocation12 + $0x48] sm:$0xff] %v2137
    %2394 = vst [vmem:[#allocation12 + $0x50] sm:$0xff] %v2138
    %2395 = vst [vmem:[#allocation12 + $0x58] sm:$0xff] %v2139
    %2396 = vst [vmem:[#allocation12 + $0x60] sm:$0xff] %v2140
    %2397 = vst [vmem:[#allocation12 + $0x68] sm:$0xff] %v2141
    %2398 = vst [vmem:[#allocation12 + $0x70] sm:$0xff] %v2142
    %2399 = vst [vmem:[#allocation12 + $0x78] sm:$0xff] %v2143
    %2400 = vst [vmem:[#allocation12 + $0x80] sm:$0xff] %v2144
    %2401 = vst [vmem:[#allocation12 + $0x88] sm:$0xff] %v2145
    %2402 = vst [vmem:[#allocation12 + $0x90] sm:$0xff] %v2146
    %2403 = vst [vmem:[#allocation12 + $0x98] sm:$0xff] %v2147
    %2404 = vst [vmem:[#allocation12 + $0xa0] sm:$0xff] %v2148
    %2405 = vst [vmem:[#allocation12 + $0xa8] sm:$0xff] %v2149
    %2406 = vst [vmem:[#allocation12 + $0xb0] sm:$0xff] %v2150
    %2407 = vst [vmem:[#allocation12 + $0xb8] sm:$0xff] %v2151
    %2408 = vst [vmem:[#allocation12 + $0xc0] sm:$0xff] %v2152
    %2409 = vst [vmem:[#allocation12 + $0xc8] sm:$0xff] %v2153
    %2410 = vst [vmem:[#allocation12 + $0xd0] sm:$0xff] %v2154
    %2411 = vst [vmem:[#allocation12 + $0xd8] sm:$0xff] %v2155
    %2412 = vst [vmem:[#allocation12 + $0xe0] sm:$0xff] %v2156
    %2413 = vst [vmem:[#allocation12 + $0xe8] sm:$0xff] %v2157
    %2414 = vst [vmem:[#allocation12 + $0xf0] sm:$0xff] %v2158
    %2415 = vst [vmem:[#allocation12 + $0xf8] sm:$0xff] %v2159
    %2416 = vst [vmem:[#allocation12 + $0x100] sm:$0xff] %v2160
    %2417 = vst [vmem:[#allocation12 + $0x108] sm:$0xff] %v2161
    %2418 = vst [vmem:[#allocation12 + $0x110] sm:$0xff] %v2162
    %2419 = vst [vmem:[#allocation12 + $0x118] sm:$0xff] %v2163
    %2420 = vst [vmem:[#allocation12 + $0x120] sm:$0xff] %v2164
    %2421 = vst [vmem:[#allocation12 + $0x128] sm:$0xff] %v2165
    %2422 = vst [vmem:[#allocation12 + $0x130] sm:$0xff] %v2166
    %2423 = vst [vmem:[#allocation12 + $0x138] sm:$0xff] %v2167
    %2424 = vst [vmem:[#allocation12 + $0x140] sm:$0xff] %v2168
    %2425 = vst [vmem:[#allocation12 + $0x148] sm:$0xff] %v2169
    %2426 = vst [vmem:[#allocation12 + $0x150] sm:$0xff] %v2170
    %2427 = vst [vmem:[#allocation12 + $0x158] sm:$0xff] %v2171
    %2428 = vst [vmem:[#allocation12 + $0x160] sm:$0xff] %v2172
    %2429 = vst [vmem:[#allocation12 + $0x168] sm:$0xff] %v2173
    %2430 = vst [vmem:[#allocation12 + $0x170] sm:$0xff] %v2174
    %2431 = vst [vmem:[#allocation12 + $0x178] sm:$0xff] %v2175
    %2432 = vst [vmem:[#allocation12 + $0x180] sm:$0xff] %v2176
    %2433 = vst [vmem:[#allocation12 + $0x188] sm:$0xff] %v2177
    %2434 = vst [vmem:[#allocation12 + $0x190] sm:$0xff] %v2178
    %2435 = vst [vmem:[#allocation12 + $0x198] sm:$0xff] %v2179
    %2436 = vst [vmem:[#allocation12 + $0x1a0] sm:$0xff] %v2180
    %2437 = vst [vmem:[#allocation12 + $0x1a8] sm:$0xff] %v2181
    %2438 = vst [vmem:[#allocation12 + $0x1b0] sm:$0xff] %v2182
    %2439 = vst [vmem:[#allocation12 + $0x1b8] sm:$0xff] %v2183
    %2440 = vst [vmem:[#allocation12 + $0x1c0] sm:$0xff] %v2184
    %2441 = vst [vmem:[#allocation12 + $0x1c8] sm:$0xff] %v2185
    %2442 = vst [vmem:[#allocation12 + $0x1d0] sm:$0xff] %v2186
    %2443 = vst [vmem:[#allocation12 + $0x1d8] sm:$0xff] %v2187
    %2444 = vst [vmem:[#allocation12 + $0x1e0] sm:$0xff] %v2188
    %2445 = vst [vmem:[#allocation12 + $0x1e8] sm:$0xff] %v2189
    %2446 = vst [vmem:[#allocation12 + $0x1f0] sm:$0xff] %v2190
    %2447 = vst [vmem:[#allocation12 + $0x1f8] sm:$0xff] %v2191
    // Predicated region
    $region54: #{tpu_custom_call.1} parent=1 // pred_check
      _
    $region55: #{tpu_custom_call.1} parent=1 // pred_check_branch
      %2449 = sbr.rel (0) target = $region57
    $region56: #{tpu_custom_call.1} parent=1 // pred_region
      %s2451 = ssub.s32 8192, 8192
      %2452 = vsyncadd [#allocation4], %s2451
      %s2453 = sshll.u32 [#allocation8], 4
      %s2454 = int_to_ptr.vmem [resolvable:$true] %s2453
      %2459 = dma.vmem_to_hbm [thread:$0]  %s2454, 8192, %s10, [#allocation4], 128, 128, 8
    $region57: #{tpu_custom_call.1} parent=1 // pred_fallthru
      _
    // Predicated region
    $region58: #{tpu_custom_call.1} parent=1 // pred_check
      _
    $region59: #{tpu_custom_call.1} parent=1 // pred_check_branch
      %2461 = sbr.rel (0) target = $region61
    $region60: #{tpu_custom_call.1} parent=1 // pred_region
      %s2463 = ssub.s32 8192, 8192
      %2464 = vsyncadd [#allocation10], %s2463
      %s2465 = sshll.u32 [#allocation9], 4
      %s2466 = int_to_ptr.vmem [resolvable:$true] %s2465
      %2471 = dma.vmem_to_hbm [thread:$0]  %s2466, 8192, %s11, [#allocation10], 128, 128, 8
    $region61: #{tpu_custom_call.1} parent=1 // pred_fallthru
      _
    // Predicated region
    $region62: #{tpu_custom_call.1} parent=1 // pred_check
      _
    $region63: #{tpu_custom_call.1} parent=1 // pred_check_branch
      %2473 = sbr.rel (0) target = $region65
    $region64: #{tpu_custom_call.1} parent=1 // pred_region
      %s2475 = ssub.s32 8192, 8192
      %2476 = vsyncadd [#allocation10], %s2475
      %s2477 = sshll.u32 [#allocation11], 4
      %s2478 = int_to_ptr.vmem [resolvable:$true] %s2477
      %2483 = dma.vmem_to_hbm [thread:$0]  %s2478, 8192, %s12, [#allocation10], 128, 128, 8
    $region65: #{tpu_custom_call.1} parent=1 // pred_fallthru
      _
    // Predicated region
    $region66: #{tpu_custom_call.1} parent=1 // pred_check
      _
    $region67: #{tpu_custom_call.1} parent=1 // pred_check_branch
      %2485 = sbr.rel (0) target = $region69
    $region68: #{tpu_custom_call.1} parent=1 // pred_region
      %s2487 = ssub.s32 8192, 8192
      %2488 = vsyncadd [#allocation13], %s2487
      %s2489 = sshll.u32 [#allocation12], 4
      %s2490 = int_to_ptr.vmem [resolvable:$true] %s2489
      %2495 = dma.vmem_to_hbm [thread:$0]  %s2490, 8192, %s13, [#allocation13], 128, 128, 8
    $region69: #{tpu_custom_call.1} parent=1 // pred_fallthru
      _
    // Predicated region
    $region70: #{tpu_custom_call.1} parent=1 // pred_check
      _
    $region71: #{tpu_custom_call.1} parent=1 // pred_check_branch
      %2497 = sbr.rel (0) target = $region73
    $region72: #{tpu_custom_call.1} parent=1 // pred_region
      %2498 = dma.done [#allocation4], 8192
    $region73: #{tpu_custom_call.1} parent=1 // pred_fallthru
      _
    // Predicated region
    $region74: #{tpu_custom_call.1} parent=1 // pred_check
      _
    $region75: #{tpu_custom_call.1} parent=1 // pred_check_branch
      %2500 = sbr.rel (0) target = $region77
    $region76: #{tpu_custom_call.1} parent=1 // pred_region
      %2501 = dma.done [#allocation10], 8192
    $region77: #{tpu_custom_call.1} parent=1 // pred_fallthru
      _
    // Predicated region
    $region78: #{tpu_custom_call.1} parent=1 // pred_check
      _
    $region79: #{tpu_custom_call.1} parent=1 // pred_check_branch
      %2503 = sbr.rel (0) target = $region81
    $region80: #{tpu_custom_call.1} parent=1 // pred_region
      %2504 = dma.done [#allocation10], 8192
    $region81: #{tpu_custom_call.1} parent=1 // pred_fallthru
      _
    // Predicated region
    $region82: #{tpu_custom_call.1} parent=1 // pred_check
      _
    $region83: #{tpu_custom_call.1} parent=1 // pred_check_branch
      %2506 = sbr.rel (0) target = $region85
    $region84: #{tpu_custom_call.1} parent=1 // pred_region
      %2507 = dma.done [#allocation13], 8192
    $region85: #{tpu_custom_call.1} parent=1 // pred_fallthru
      _
    %2508 = vsyncpa [#allocation3], 1
    %2509 = vsyncpa [#allocation6], 1
    %2510 = vsyncpa [#allocation4], 1
    %2511 = vsyncpa [#allocation10], 1
    %2512 = vsyncpa [#allocation13], 1

</llo_original>
